<compile_context>
chip_gen: v5e
topology: v5e:2x2
jax: 0.10.0
libtpu: 0.0.40
codegen_flags: <defaults>
</compile_context>

<pallas_src>
import functools

import jax
import jax.numpy as jnp
from jax.experimental import pallas as pl
from jax.experimental.pallas import tpu as pltpu


_MIN_GRID_STEPS = 8  # keep enough parallel steps to feed v7x's 2 TensorCores


def upsample_conv_kernel(w_ref, b_ref, u_ref, x_ref, f_ref, o_ref, *, co):
    """One (batch, row-tile) step: 1x1 conv + nearest-x2 upsample + concat.

    w_ref: (Co, C)     f32  conv weight   (resident across the grid)
    b_ref: (Co, 1)     f32  conv bias
    u_ref: (T, 4T)     f32  0/1 duplication matrix, T = t_h * W conv columns
    x_ref: (C, T)      f32  activations for t_h input rows (flattened spatial)
    f_ref: (Co, 4T)    f32  skip feature map for the matching 2*t_h output rows
    o_ref: (C, 4T)     f32  fused output block: [conv+upsample ; feature_map]
    """
    w = w_ref[...].astype(jnp.bfloat16)
    x = x_ref[...].astype(jnp.bfloat16)      # in-kernel cast: halves x HBM traffic
    acc = jnp.dot(w, x, preferred_element_type=jnp.float32) + b_ref[...]

    # Nearest-neighbour x2 upsample of the conv tile as an exact 0/1 matmul.
    up = jnp.dot(acc.astype(u_ref.dtype), u_ref[...],
                 preferred_element_type=jnp.float32,
                 precision=jax.lax.Precision.HIGHEST)

    o_ref[:co, :] = up.astype(o_ref.dtype)
    o_ref[co:, :] = f_ref[...].astype(o_ref.dtype)


def _dup_matrix(t_h, width, dtype):
    """0/1 matrix mapping a (t_h*W)-column conv tile to its (4*t_h*W)-column
    nearest-x2-upsampled tile (flattened NCHW rows: out row pair 2h,2h+1)."""
    t_hw = t_h * width
    l = jnp.arange(t_hw)                                    # = h*W + w
    m = jnp.arange(4 * t_hw)                                # = h*4W + r*2W + 2w + s
    src = (m // (4 * width)) * width + (m % (2 * width)) // 2
    return (src[None, :] == l[:, None]).astype(dtype)


def _vmem_bytes(t_hw, c_in, c_out, dup_itemsize):
    """Conservative per-grid-step VMEM footprint (double-buffered blocks +
    resident weights + f32 intermediates + duplication matrix)."""
    f32 = 4
    io = 2 * (c_in * t_hw * f32              # x block (f32, cast in kernel)
              + c_out * 4 * t_hw * f32       # feature-map block
              + c_in * 4 * t_hw * f32)       # fused output block
    dup = 2 * t_hw * 4 * t_hw * dup_itemsize
    wgt = 2 * (c_out * c_in * f32 + c_out * 128 * f32)
    interm = (c_in * t_hw * 2                # bf16 activation copy
              + c_out * t_hw * f32           # conv accumulator
              + c_out * 4 * t_hw * f32)      # duplicated tile before store
    return io + dup + wgt + interm


def _vmem_budget_and_cap():
    try:
        cap = int(pltpu.get_tpu_info().vmem_capacity_bytes)
    except Exception:
        cap = 64 * 1024 * 1024               # v7x-conservative fallback
    return min(cap // 2, 48 * 1024 * 1024), cap


def _pick_row_tile(n, c_in, c_out, h, width, dup_itemsize, budget, cap_cols):
    """Rows of the input image per grid step.  Constraints:
    t_h | H; t_h*W a multiple of 128 (or the full extent); footprint <= budget;
    t_h*W <= cap_cols (keeps the quadratic duplication matmul cheap); and
    enough total grid steps for megacore sharding / pipelining."""
    cand = [t for t in range(1, h + 1)
            if h % t == 0 and ((t * width) % 128 == 0 or t == h)]
    ok = [t for t in cand
          if t * width <= cap_cols
          and _vmem_bytes(t * width, c_in, c_out, dup_itemsize) <= budget]
    if not ok:
        ok = [min(cand)]
    t_h = max(ok)
    while n * (h // t_h) < _MIN_GRID_STEPS:
        smaller = [t for t in ok if t < t_h]
        if not smaller:
            break
        t_h = max(smaller)
    return t_h


def upsample_forward(x, feature_map, weight, bias, *, dup_dtype=jnp.float32):
    """UpSample.forward: conv1x1 (applied before the commuting nearest-x2
    upsample), upsample, and channel concat, all in one Pallas pass."""
    N, C, H, W = x.shape
    Co = weight.shape[0]                      # = C // 2
    assert weight.shape[1] == C
    assert feature_map.shape == (N, Co, 2 * H, 2 * W)

    dup_itemsize = jnp.dtype(dup_dtype).itemsize
    budget, cap = _vmem_budget_and_cap()
    # f32 duplication keeps the copy exact; bf16 would allow ~2x bigger tiles.
    cap_cols = 512 if dup_itemsize == 2 else 256
    t_h = _pick_row_tile(N, C, Co, H, W, dup_itemsize, budget, cap_cols)
    t_hw = t_h * W

    est = _vmem_bytes(t_hw, C, Co, dup_itemsize)
    vmem_limit = min(int(cap * 3 // 4), max(32 << 20, int(est * 3 // 2)))
    vmem_limit = max(vmem_limit, min(cap, est + (4 << 20)))

    # Free, contiguous reinterpretations only (no data movement).
    x_flat = x.reshape(N, C, H * W)
    f_flat = feature_map.reshape(N, Co, 4 * H * W)
    w2 = weight.reshape(Co, C).astype(jnp.float32)
    b2 = bias.reshape(Co, 1).astype(jnp.float32)
    dup = _dup_matrix(t_h, W, dup_dtype)

    out_flat = pl.pallas_call(
        functools.partial(upsample_conv_kernel, co=Co),
        out_shape=jax.ShapeDtypeStruct((N, C, 4 * H * W), x.dtype),
        grid_spec=pltpu.PrefetchScalarGridSpec(
            num_scalar_prefetch=0,
            grid=(N, H // t_h),
            in_specs=[
                pl.BlockSpec((Co, C), lambda n, j: (0, 0)),           # weight
                pl.BlockSpec((Co, 1), lambda n, j: (0, 0)),           # bias
                pl.BlockSpec((t_hw, 4 * t_hw), lambda n, j: (0, 0)),  # dup mat
                pl.BlockSpec((None, C, t_hw), lambda n, j: (n, 0, j)),
                pl.BlockSpec((None, Co, 4 * t_hw), lambda n, j: (n, 0, j)),
            ],
            out_specs=pl.BlockSpec((None, C, 4 * t_hw),
                                   lambda n, j: (n, 0, j)),
        ),
        compiler_params=pltpu.CompilerParams(
            dimension_semantics=("parallel", "parallel"),
            vmem_limit_bytes=vmem_limit),
    )(w2, b2, dup, x_flat, f_flat)

    # Contiguous bitcast-level reshape back to NCHW at the upsampled resolution.
    # TODO(synk): if profiles ever show the f32 duplication matmul binding on
    # v5e at the deepest (largest-Co) layers, pass dup_dtype=jnp.bfloat16.
    return out_flat.reshape(N, C, 2 * H, 2 * W)


if __name__ == "__main__":
    key = jax.random.PRNGKey(0)
    k_x, k_f, k_w, k_b = jax.random.split(key, 4)

    N, C, H, W = 2, 4, 16, 16
    Co = C // 2

    x = jax.random.normal(k_x, (N, C, H, W), dtype=jnp.float32)
    feature_map = jax.random.normal(k_f, (N, Co, 2 * H, 2 * W),
                                    dtype=jnp.float32)

    # Deterministic synthetic Conv2d(C, C//2, 1, 1) parameters.
    weight = jax.random.normal(k_w, (Co, C, 1, 1), dtype=jnp.float32) * (1.0 / C)
    bias = jax.random.normal(k_b, (Co,), dtype=jnp.float32) * 0.1

    fwd = jax.jit(upsample_forward)
    out = jax.block_until_ready(fwd(x, feature_map, weight, bias))
    assert out.shape == (N, C, 2 * H, 2 * W), out.shape

    # Pure-JAX reference in the ORIGINAL op order (upsample -> conv -> concat),
    # with the same bf16 rounding of the matmul inputs that the MXU path uses.
    x_bf = x.astype(jnp.bfloat16).astype(jnp.float32)
    w_bf = weight.reshape(Co, C).astype(jnp.bfloat16).astype(jnp.float32)
    up_ref = jnp.repeat(jnp.repeat(x_bf, 2, axis=2), 2, axis=3)
    conv_ref = jnp.einsum("nchw,oc->nohw", up_ref, w_bf,
                          precision=jax.lax.Precision.HIGHEST) \
        + bias[None, :, None, None]
    ref = jnp.concatenate([conv_ref, feature_map], axis=1)

    err = float(jnp.max(jnp.abs(out - ref)))
    assert jnp.allclose(out, ref, atol=5e-4, rtol=5e-4), err
    print("KERNEL_OK")
</pallas_src>

<mosaic_0001>
module attributes {stable_mosaic.version = 11 : i64} {
  func.func @upsample_conv_kernel(%arg0: i32, %arg1: i32, %arg2: memref<2x4xf32, #tpu.memory_space<vmem>>, %arg3: memref<2x1xf32, #tpu.memory_space<vmem>>, %arg4: memref<128x512xf32, #tpu.memory_space<vmem>>, %arg5: memref<1x4x128xf32, #tpu.memory_space<vmem>>, %arg6: memref<1x2x512xf32, #tpu.memory_space<vmem>>, %arg7: memref<1x4x512xf32, #tpu.memory_space<vmem>>) attributes {dimension_semantics = [#tpu.dimension_semantics<parallel>, #tpu.dimension_semantics<parallel>], iteration_bounds = array<i64: 2, 2>, scalar_prefetch = 0 : i64, scratch_operands = 0 : i64, tpu.core_type = #tpu.core_type<tc>, window_params = [{pipeline_mode = #tpu.pipeline_mode<synchronous>, transform_indices = @transform_0, window_bounds = array<i64: 2, 4>}, {pipeline_mode = #tpu.pipeline_mode<synchronous>, transform_indices = @transform_1, window_bounds = array<i64: 2, 1>}, {pipeline_mode = #tpu.pipeline_mode<synchronous>, transform_indices = @transform_2, window_bounds = array<i64: 128, 512>}, {transform_indices = @transform_3, window_bounds = array<i64: 1, 4, 128>}, {transform_indices = @transform_4, window_bounds = array<i64: 1, 2, 512>}, {transform_indices = @transform_5, window_bounds = array<i64: 1, 4, 512>}]} {
    %c0 = arith.constant 0 : index
    %c0_0 = arith.constant 0 : index
    %0 = vector.load %arg2[%c0, %c0_0] : memref<2x4xf32, #tpu.memory_space<vmem>>, vector<2x4xf32>
    %1 = arith.truncf %0 : vector<2x4xf32> to vector<2x4xbf16>
    %c0_1 = arith.constant 0 : index
    %c0_2 = arith.constant 0 : index
    %c0_3 = arith.constant 0 : index
    %2 = vector.load %arg5[%c0_1, %c0_2, %c0_3] : memref<1x4x128xf32, #tpu.memory_space<vmem>>, vector<1x4x128xf32>
    %3 = vector.shape_cast %2 : vector<1x4x128xf32> to vector<4x128xf32>
    %4 = arith.truncf %3 : vector<4x128xf32> to vector<4x128xbf16>
    %cst = arith.constant dense<0.000000e+00> : vector<2x128xf32>
    %5 = tpu.matmul %1, %4, %cst {dimension_numbers = #tpu.dot_dimension_numbers<[1], [0], [0], [1], [0, 0, 1, 1], [], []>} : vector<2x4xbf16>, vector<4x128xbf16>, vector<2x128xf32> -> vector<2x128xf32>
    %c0_4 = arith.constant 0 : index
    %c0_5 = arith.constant 0 : index
    %6 = vector.load %arg3[%c0_4, %c0_5] : memref<2x1xf32, #tpu.memory_space<vmem>>, vector<2x1xf32>
    %7 = vector.broadcast %6 : vector<2x1xf32> to vector<2x128xf32>
    %8 = arith.addf %5, %7 : vector<2x128xf32>
    %c0_6 = arith.constant 0 : index
    %c0_7 = arith.constant 0 : index
    %9 = vector.load %arg4[%c0_6, %c0_7] : memref<128x512xf32, #tpu.memory_space<vmem>>, vector<128x512xf32>
    %cst_8 = arith.constant dense<0.000000e+00> : vector<2x512xf32>
    %10 = tpu.matmul %8, %9, %cst_8 {dimension_numbers = #tpu.dot_dimension_numbers<[1], [0], [0], [1], [0, 0, 1, 1], [], []>, precision = #tpu.contract_precision<fp32>} : vector<2x128xf32>, vector<128x512xf32>, vector<2x512xf32> -> vector<2x512xf32>
    %c0_9 = arith.constant 0 : index
    %c0_10 = arith.constant 0 : index
    %c0_11 = arith.constant 0 : index
    %11 = vector.load %arg7[%c0_9, %c0_10, %c0_11] : memref<1x4x512xf32, #tpu.memory_space<vmem>>, vector<1x2x512xf32>
    %12 = vector.shape_cast %11 : vector<1x2x512xf32> to vector<2x512xf32>
    %13 = vector.shape_cast %10 : vector<2x512xf32> to vector<1x2x512xf32>
    tpu.vector_store %arg7[%c0_9, %c0_10, %c0_11], %13 {strides = array<i32>} : memref<1x4x512xf32, #tpu.memory_space<vmem>>, vector<1x2x512xf32>,
    %c0_12 = arith.constant 0 : index
    %c0_13 = arith.constant 0 : index
    %c0_14 = arith.constant 0 : index
    %14 = vector.load %arg6[%c0_12, %c0_13, %c0_14] : memref<1x2x512xf32, #tpu.memory_space<vmem>>, vector<1x2x512xf32>
    %15 = vector.shape_cast %14 : vector<1x2x512xf32> to vector<2x512xf32>
    %c0_15 = arith.constant 0 : index
    %c2 = arith.constant 2 : index
    %c0_16 = arith.constant 0 : index
    %16 = vector.load %arg7[%c0_15, %c2, %c0_16] : memref<1x4x512xf32, #tpu.memory_space<vmem>>, vector<1x2x512xf32>
    %17 = vector.shape_cast %16 : vector<1x2x512xf32> to vector<2x512xf32>
    %18 = vector.shape_cast %15 : vector<2x512xf32> to vector<1x2x512xf32>
    tpu.vector_store %arg7[%c0_15, %c2, %c0_16], %18 {strides = array<i32>} : memref<1x4x512xf32, #tpu.memory_space<vmem>>, vector<1x2x512xf32>,
    return
  }
  func.func @transform_0(%arg0: i32, %arg1: i32) -> (i32, i32) {
    %c0_i32 = arith.constant 0 : i32
    %c0_i32_0 = arith.constant 0 : i32
    %c0_i32_1 = arith.constant 0 : i32
    return %c0_i32, %c0_i32_0 : i32, i32
  }
  func.func @transform_1(%arg0: i32, %arg1: i32) -> (i32, i32) {
    %c0_i32 = arith.constant 0 : i32
    %c0_i32_0 = arith.constant 0 : i32
    %c0_i32_1 = arith.constant 0 : i32
    return %c0_i32, %c0_i32_0 : i32, i32
  }
  func.func @transform_2(%arg0: i32, %arg1: i32) -> (i32, i32) {
    %c0_i32 = arith.constant 0 : i32
    %c0_i32_0 = arith.constant 0 : i32
    %c0_i32_1 = arith.constant 0 : i32
    return %c0_i32, %c0_i32_0 : i32, i32
  }
  func.func @transform_3(%arg0: i32, %arg1: i32) -> (i32, i32, i32) {
    %c0_i32 = arith.constant 0 : i32
    %c0_i32_0 = arith.constant 0 : i32
    return %arg0, %c0_i32, %arg1 : i32, i32, i32
  }
  func.func @transform_4(%arg0: i32, %arg1: i32) -> (i32, i32, i32) {
    %c0_i32 = arith.constant 0 : i32
    %c0_i32_0 = arith.constant 0 : i32
    return %arg0, %c0_i32, %arg1 : i32, i32, i32
  }
  func.func @transform_5(%arg0: i32, %arg1: i32) -> (i32, i32, i32) {
    %c0_i32 = arith.constant 0 : i32
    %c0_i32_0 = arith.constant 0 : i32
    return %arg0, %c0_i32, %arg1 : i32, i32, i32
  }
}

</mosaic_0001>

<llo_original>
// kernel: upsample_forward.1
$region0: #{upsample_forward.1}
  #allocation0 [shape = 'u32[]', space=smem, size = 0x4, offset = 0x4, fixed_abs, tag = 'smem constant byte address 0x4 - core index']
  #allocation1 [shape = 'u32[72,128]{1,0:T(1,128)}', space=vmem, size = 0x9000, scoped, tag = 'internal scratch']
  %s0 = inlined_call_operand.vmem [shape: f32[2,4], index: 0, kind: input, shape index: {}]
  %s1 = inlined_call_operand.vmem [shape: f32[2,1], index: 1, kind: input, shape index: {}]
  %s2 = inlined_call_operand.vmem [shape: f32[128,512], index: 2, kind: input, shape index: {}]
  %s3 = inlined_call_operand.vmem [shape: f32[2,4,256], index: 3, kind: input, shape index: {}]
  %s4 = inlined_call_operand.vmem [shape: f32[2,2,1024], index: 4, kind: input, shape index: {}]
  %s5 = inlined_call_operand.vmem [shape: f32[2,4,1024], index: 5, kind: output, shape index: {}]
  %s6 = sld [smem:[#allocation0]]
  $region53: #{upsample_forward.1} parent=0
    _
  %s8 = ssub.s32 1, %s6
  %s9 = scalar_select 0, %s8, %s6
  loop: start=0, step=1, limit=6
  $region2: #{upsample_forward.1} parent=0 // loop_pre_header
    _
  $region3: #{upsample_forward.1} parent=0 // loop_header
    %s11 = sphi 0, %s15
    %p12 = scmp.ge.s32.totalorder %s11, 6
    %s18 = sphi 0, %s30
    %s19 = sphi 0, %s26
    %s20 = sphi 0, %s18
    %s21 = sphi 0, %s19
    %s22 = sphi 0, %s20
    %s23 = sphi 0, %s21
    %s31 = sphi 0, %s31
    %s33 = sphi 0, %s31
    %s34 = sphi 0, %s33
    %s48 = sphi 0, %s34
    %s52 = sphi 0, %s52
    %s54 = sphi 0, %s52
    %s55 = sphi 0, %s54
    %s69 = sphi 0, %s55
    %s73 = sphi 0, %s73
    %s75 = sphi 0, %s73
    %s76 = sphi 0, %s75
    %s90 = sphi 0, %s76
    %s98 = sphi 0, %s100
    %s101 = sphi 0, %s98
    %s102 = sphi 0, %s101
    %s118 = sphi 0, %s102
    %s126 = sphi 0, %s128
    %s129 = sphi 0, %s126
    %s130 = sphi 0, %s129
    %s146 = sphi 0, %s130
    %s154 = sphi 0, %s156
    %s157 = sphi 0, %s154
    %s158 = sphi 0, %s157
    %s174 = sphi 0, %s158
  $region4: #{upsample_forward.1} parent=0 // loop_header_branch
    %14 = sbr.rel (%p12) target = $region8
  $region5: #{upsample_forward.1} parent=0 // loop_body
    %s16 = ssub.s32 %s11, 1
    %s17 = ssub.s32 %s11, 2
    %s24 = sadd.s32 1, %s19
    %p25 = scmp.ge.s32.totalorder %s24, 2
    %s26 = scalar_select %p25, 0, %s24
    %s27 = sadd.s32 1, %s18
    %s28 = scalar_select %p25, %s27, %s18
    %p29 = scmp.ge.s32.totalorder %s28, 2
    %s30 = scalar_select %p29, 0, %s28
    %s32 = sadd.s32 %s31, 1
    %p35 = scmp.eq.s32.totalorder %s11, 3
    %p36 = scmp.ne.s32.totalorder %s31, %s33
    %p37 = scmp.eq.s32.totalorder %s11, 0
    %p38 = por %p36, %p37
    %p39 = scmp.ne.s32.totalorder %s31, %s33
    %p40 = scmp.eq.s32.totalorder %s16, 3
    %p41 = por %p39, %p40
    %p42 = scmp.ne.s32.totalorder %s33, %s34
    %p43 = scmp.eq.s32.totalorder %s16, 0
    %p44 = por %p42, %p43
    %p45 = scmp.ne.s32.totalorder %s33, %s34
    %p46 = scmp.eq.s32.totalorder %s17, 3
    %p47 = por %p45, %p46
    %p49 = scmp.ne.s32.totalorder %s34, %s48
    %p50 = scmp.eq.s32.totalorder %s17, 0
    %p51 = por %p49, %p50
    %s53 = sadd.s32 %s52, 1
    %p56 = scmp.eq.s32.totalorder %s11, 3
    %p57 = scmp.ne.s32.totalorder %s52, %s54
    %p58 = scmp.eq.s32.totalorder %s11, 0
    %p59 = por %p57, %p58
    %p60 = scmp.ne.s32.totalorder %s52, %s54
    %p61 = scmp.eq.s32.totalorder %s16, 3
    %p62 = por %p60, %p61
    %p63 = scmp.ne.s32.totalorder %s54, %s55
    %p64 = scmp.eq.s32.totalorder %s16, 0
    %p65 = por %p63, %p64
    %p66 = scmp.ne.s32.totalorder %s54, %s55
    %p67 = scmp.eq.s32.totalorder %s17, 3
    %p68 = por %p66, %p67
    %p70 = scmp.ne.s32.totalorder %s55, %s69
    %p71 = scmp.eq.s32.totalorder %s17, 0
    %p72 = por %p70, %p71
    %s74 = sadd.s32 %s73, 1
    %p77 = scmp.eq.s32.totalorder %s11, 3
    %p78 = scmp.ne.s32.totalorder %s73, %s75
    %p79 = scmp.eq.s32.totalorder %s11, 0
    %p80 = por %p78, %p79
    %p81 = scmp.ne.s32.totalorder %s73, %s75
    %p82 = scmp.eq.s32.totalorder %s16, 3
    %p83 = por %p81, %p82
    %p84 = scmp.ne.s32.totalorder %s75, %s76
    %p85 = scmp.eq.s32.totalorder %s16, 0
    %p86 = por %p84, %p85
    %p87 = scmp.ne.s32.totalorder %s75, %s76
    %p88 = scmp.eq.s32.totalorder %s17, 3
    %p89 = por %p87, %p88
    %p91 = scmp.ne.s32.totalorder %s76, %s90
    %p92 = scmp.eq.s32.totalorder %s17, 0
    %p93 = por %p91, %p92
    %s94 = ssub.s32 %s18, %s30
    %s95 = ssub.s32 %s19, %s26
    %s96 = sor.u32 %s94, %s95
    %p97 = scmp.eq.s32.totalorder %s96, 0
    %s99 = sadd.s32 %s98, 1
    %s100 = scalar_select %p97, %s98, %s99
    %p103 = pneg %p97
    %p104 = scmp.eq.s32.totalorder %s11, 3
    %p105 = por %p103, %p104
    %p106 = scmp.ne.s32.totalorder %s98, %s101
    %p107 = scmp.eq.s32.totalorder %s11, 0
    %p108 = por %p106, %p107
    %p109 = scmp.ne.s32.totalorder %s98, %s101
    %p110 = scmp.eq.s32.totalorder %s16, 3
    %p111 = por %p109, %p110
    %p112 = scmp.ne.s32.totalorder %s101, %s102
    %p113 = scmp.eq.s32.totalorder %s16, 0
    %p114 = por %p112, %p113
    %p115 = scmp.ne.s32.totalorder %s101, %s102
    %p116 = scmp.eq.s32.totalorder %s17, 3
    %p117 = por %p115, %p116
    %p119 = scmp.ne.s32.totalorder %s102, %s118
    %p120 = scmp.eq.s32.totalorder %s17, 0
    %p121 = por %p119, %p120
    %s122 = ssub.s32 %s18, %s30
    %s123 = ssub.s32 %s19, %s26
    %s124 = sor.u32 %s122, %s123
    %p125 = scmp.eq.s32.totalorder %s124, 0
    %s127 = sadd.s32 %s126, 1
    %s128 = scalar_select %p125, %s126, %s127
    %p131 = pneg %p125
    %p132 = scmp.eq.s32.totalorder %s11, 3
    %p133 = por %p131, %p132
    %p134 = scmp.ne.s32.totalorder %s126, %s129
    %p135 = scmp.eq.s32.totalorder %s11, 0
    %p136 = por %p134, %p135
    %p137 = scmp.ne.s32.totalorder %s126, %s129
    %p138 = scmp.eq.s32.totalorder %s16, 3
    %p139 = por %p137, %p138
    %p140 = scmp.ne.s32.totalorder %s129, %s130
    %p141 = scmp.eq.s32.totalorder %s16, 0
    %p142 = por %p140, %p141
    %p143 = scmp.ne.s32.totalorder %s129, %s130
    %p144 = scmp.eq.s32.totalorder %s17, 3
    %p145 = por %p143, %p144
    %p147 = scmp.ne.s32.totalorder %s130, %s146
    %p148 = scmp.eq.s32.totalorder %s17, 0
    %p149 = por %p147, %p148
    %s150 = ssub.s32 %s18, %s30
    %s151 = ssub.s32 %s19, %s26
    %s152 = sor.u32 %s150, %s151
    %p153 = scmp.eq.s32.totalorder %s152, 0
    %s155 = sadd.s32 %s154, 1
    %s156 = scalar_select %p153, %s154, %s155
    %p159 = pneg %p153
    %p160 = scmp.eq.s32.totalorder %s11, 3
    %p161 = por %p159, %p160
    %p162 = scmp.ne.s32.totalorder %s154, %s157
    %p163 = scmp.eq.s32.totalorder %s11, 0
    %p164 = por %p162, %p163
    %p165 = scmp.ne.s32.totalorder %s154, %s157
    %p166 = scmp.eq.s32.totalorder %s16, 3
    %p167 = por %p165, %p166
    %p168 = scmp.ne.s32.totalorder %s157, %s158
    %p169 = scmp.eq.s32.totalorder %s16, 0
    %p170 = por %p168, %p169
    %p171 = scmp.ne.s32.totalorder %s157, %s158
    %p172 = scmp.eq.s32.totalorder %s17, 3
    %p173 = por %p171, %p172
    %p175 = scmp.ne.s32.totalorder %s158, %s174
    %p176 = scmp.eq.s32.totalorder %s17, 0
    %p177 = por %p175, %p176
    %p178 = scmp.le.s32.totalorder 1, %s11
    %p179 = scmp.lt.s32.totalorder %s11, 5
    %p180 = pnand %p178, %p179
    %p181 = pneg %p180
    // Predicated region
    $region9: #{upsample_forward.1} parent=5 // pred_check
      _
    $region10: #{upsample_forward.1} parent=5 // pred_check_branch
      %183 = sbr.rel (%p180) target = $region12
    $region11: #{upsample_forward.1} parent=5 // pred_region
      %s184 = ssub.s32 %s11, 1
      // Predicated region
      $region13: #{upsample_forward.1} parent=11 // pred_check
        %p185 = pneg %p44
      $region14: #{upsample_forward.1} parent=11 // pred_check_branch
        %187 = sbr.rel (%p185) target = $region16
      $region15: #{upsample_forward.1} parent=11 // pred_region
        _
      $region16: #{upsample_forward.1} parent=11 // pred_fallthru
        _
      // Predicated region
      $region17: #{upsample_forward.1} parent=11 // pred_check
        %p188 = pneg %p65
      $region18: #{upsample_forward.1} parent=11 // pred_check_branch
        %190 = sbr.rel (%p188) target = $region20
      $region19: #{upsample_forward.1} parent=11 // pred_region
        _
      $region20: #{upsample_forward.1} parent=11 // pred_fallthru
        _
      // Predicated region
      $region21: #{upsample_forward.1} parent=11 // pred_check
        %p191 = pneg %p86
      $region22: #{upsample_forward.1} parent=11 // pred_check_branch
        %193 = sbr.rel (%p191) target = $region24
      $region23: #{upsample_forward.1} parent=11 // pred_region
        _
      $region24: #{upsample_forward.1} parent=11 // pred_fallthru
        _
    $region12: #{upsample_forward.1} parent=5 // pred_fallthru
      _
    %p194 = scmp.lt.s32.totalorder %s11, 4
    // Predicated region
    $region25: #{upsample_forward.1} parent=5 // pred_check
      %p195 = pneg %p194
    $region26: #{upsample_forward.1} parent=5 // pred_check_branch
      %197 = sbr.rel (%p195) target = $region28
    $region27: #{upsample_forward.1} parent=5 // pred_region
      // Predicated region
      $region29: #{upsample_forward.1} parent=27 // pred_check
        %p198 = pneg %p108
      $region30: #{upsample_forward.1} parent=27 // pred_check_branch
        %200 = sbr.rel (%p198) target = $region32
      $region31: #{upsample_forward.1} parent=27 // pred_region
        %p201 = scmp.lt.s32.totalorder %s18, 1
        %s202 = scalar_select %p201, %s18, 1
        %p203 = scmp.lt.s32.totalorder %s19, 1
        %s204 = scalar_select %p203, %s19, 1
        %s205 = smul.addr %s202, 2
        %s206 = sadd.s32 %s204, %s205
        %s207 = smul.addr %s206, 4
        %s208 = scalar_lea.vmem %s3, %s207
      $region32: #{upsample_forward.1} parent=27 // pred_fallthru
        _
      // Predicated region
      $region33: #{upsample_forward.1} parent=27 // pred_check
        %p209 = pneg %p136
      $region34: #{upsample_forward.1} parent=27 // pred_check_branch
        %211 = sbr.rel (%p209) target = $region36
      $region35: #{upsample_forward.1} parent=27 // pred_region
        %s212 = smul.u32 4, %s19
        %p213 = scmp.lt.s32.totalorder %s18, 1
        %s214 = scalar_select %p213, %s18, 1
        %p215 = scmp.lt.s32.totalorder %s212, 7
        %s216 = scalar_select %p215, %s212, 7
        %s217 = smul.addr %s214, 8
        %s218 = sadd.s32 %s216, %s217
        %s219 = smul.addr %s218, 2
        %s220 = scalar_lea.vmem %s4, %s219
        %s221 = smul.u32 4, %s19
      $region36: #{upsample_forward.1} parent=27 // pred_fallthru
        _
    $region28: #{upsample_forward.1} parent=5 // pred_fallthru
      _
    %p222 = scmp.le.s32.totalorder 1, %s11
    %p223 = scmp.lt.s32.totalorder %s11, 5
    %p224 = pnand %p222, %p223
    %p225 = pneg %p224
    // Predicated region
    $region37: #{upsample_forward.1} parent=5 // pred_check
      _
    $region38: #{upsample_forward.1} parent=5 // pred_check_branch
      %227 = sbr.rel (%p224) target = $region40
    $region39: #{upsample_forward.1} parent=5 // pred_region
      %s228 = ssub.s32 %s11, 1
      %p229 = pneg %p44
      %p230 = pneg %p41
      %p231 = pneg %p65
      %p232 = pneg %p62
      %p233 = pneg %p86
      %p234 = pneg %p83
      %p235 = scmp.lt.s32.totalorder %s20, 1
      %s236 = scalar_select %p235, %s20, 1
      %p237 = scmp.lt.s32.totalorder %s21, 1
      %s238 = scalar_select %p237, %s21, 1
      %s239 = smul.addr %s236, 2
      %s240 = sadd.s32 %s238, %s239
      %s241 = smul.addr %s240, 4
      %s242 = scalar_lea.vmem %s3, %s241
      %p243 = pneg %p114
      %p244 = pneg %p111
      %s245 = smul.u32 4, %s21
      %p246 = scmp.lt.s32.totalorder %s20, 1
      %s247 = scalar_select %p246, %s20, 1
      %p248 = scmp.lt.s32.totalorder %s245, 7
      %s249 = scalar_select %p248, %s245, 7
      %s250 = smul.addr %s247, 8
      %s251 = sadd.s32 %s249, %s250
      %s252 = smul.addr %s251, 2
      %s253 = scalar_lea.vmem %s4, %s252
      %p254 = pneg %p142
      %p255 = pneg %p139
      %p256 = pneg %p170
      %p257 = pneg %p167
      %s258 = smul.u32 4, %s21
      %p259 = scmp.lt.s32.totalorder %s20, 1
      %s260 = scalar_select %p259, %s20, 1
      %p261 = scmp.lt.s32.totalorder %s258, 7
      %s262 = scalar_select %p261, %s258, 7
      %s263 = smul.addr %s260, 8
      %s264 = sadd.s32 %s262, %s263
      %s265 = smul.addr %s264, 4
      %s266 = scalar_lea.vmem %s5, %s265
      %p267 = scmp.lt.s32.totalorder %s20, 1
      %s268 = scalar_select %p267, %s20, 1
      %p269 = scmp.lt.s32.totalorder %s21, 1
      %s270 = scalar_select %p269, %s21, 1
      %s271 = smul.addr %s268, 2
      %s272 = sadd.s32 %s270, %s271
      %s273 = smul.addr %s272, 4
      %s274 = scalar_lea.vmem %s3, %s273
      %s275 = smul.u32 4, %s21
      %p276 = scmp.lt.s32.totalorder %s20, 1
      %s277 = scalar_select %p276, %s20, 1
      %p278 = scmp.lt.s32.totalorder %s275, 7
      %s279 = scalar_select %p278, %s275, 7
      %s280 = smul.addr %s277, 8
      %s281 = sadd.s32 %s279, %s280
      %s282 = smul.addr %s281, 2
      %s283 = scalar_lea.vmem %s4, %s282
      %s284 = smul.u32 4, %s21
      %s285 = smul.u32 4, %s21
      %p286 = scmp.lt.s32.totalorder %s20, 1
      %s287 = scalar_select %p286, %s20, 1
      %p288 = scmp.lt.s32.totalorder %s285, 7
      %s289 = scalar_select %p288, %s285, 7
      %s290 = smul.addr %s287, 8
      %s291 = sadd.s32 %s289, %s290
      %s292 = smul.addr %s291, 4
      %s293 = scalar_lea.vmem %s5, %s292
      %s294 = smul.u32 4, %s21
      %v296 = vld [vmem:[%s0] sm:$0x3]
      %v297 = vpack.c.bf16 %v296, %v296
      %v298 = vld [vmem:[%s274] sm:$0xf]
      %v299 = vpack.c.bf16 %v298, %v298
      %v300 = vld [vmem:[%s1] sm:$0x3]
      %302 = vset.pattern.permute.xlu0 0
      %303 = vperm.xlu0 %302, %v300
      %v304 = vpop.permute.xlu0 %303
      %vm306 = vcmask 31744
      %v308 = vsel %vm306, %v297, 0
      %vm310 = vcmask 1041408
      %v312 = vsel %vm310, %v299, 0
      %314 = vmatpush.bf16.msra.mxu0 0
      %315 = vmatpush.bf16.msra.mxu0 0
      %316 = vmatpush.bf16.msra.mxu0 0
      %317 = vmatpush.bf16.msra.mxu0 0
      %318 = vmatpush.bf16.msra.mxu0 0
      %319 = vmatpush.bf16.msra.mxu0 0
      %320 = vmatpush.bf16.msra.mxu0 0
      %321 = vmatpush.bf16.msra.mxu0 %v312
      %322 = vmatmul.bf16.gmra.mxu0 %v308
      %v323 = vpop.f32.mrf.mxu0
      %v324 = vadd.f32 %v304, %v323
      %v325 = vpop.f32.mrf.mxu0
      %326 = vdwg.mxu0
      %v327 = vld [vmem:[%s2] sm:$0xff]
      %v328 = vld [vmem:[%s2 + $0x8] sm:$0xff]
      %v329 = vld [vmem:[%s2 + $0x10] sm:$0xff]
      %v330 = vld [vmem:[%s2 + $0x18] sm:$0xff]
      %v331 = vld [vmem:[%s2 + $0x20] sm:$0xff]
      %v332 = vld [vmem:[%s2 + $0x28] sm:$0xff]
      %v333 = vld [vmem:[%s2 + $0x30] sm:$0xff]
      %v334 = vld [vmem:[%s2 + $0x38] sm:$0xff]
      %v335 = vld [vmem:[%s2 + $0x40] sm:$0xff]
      %v336 = vld [vmem:[%s2 + $0x48] sm:$0xff]
      %v337 = vld [vmem:[%s2 + $0x50] sm:$0xff]
      %v338 = vld [vmem:[%s2 + $0x58] sm:$0xff]
      %v339 = vld [vmem:[%s2 + $0x60] sm:$0xff]
      %v340 = vld [vmem:[%s2 + $0x68] sm:$0xff]
      %v341 = vld [vmem:[%s2 + $0x70] sm:$0xff]
      %v342 = vld [vmem:[%s2 + $0x78] sm:$0xff]
      %v343 = vld [vmem:[%s2 + $0x80] sm:$0xff]
      %v344 = vld [vmem:[%s2 + $0x88] sm:$0xff]
      %v345 = vld [vmem:[%s2 + $0x90] sm:$0xff]
      %v346 = vld [vmem:[%s2 + $0x98] sm:$0xff]
      %v347 = vld [vmem:[%s2 + $0xa0] sm:$0xff]
      %v348 = vld [vmem:[%s2 + $0xa8] sm:$0xff]
      %v349 = vld [vmem:[%s2 + $0xb0] sm:$0xff]
      %v350 = vld [vmem:[%s2 + $0xb8] sm:$0xff]
      %v351 = vld [vmem:[%s2 + $0xc0] sm:$0xff]
      %v352 = vld [vmem:[%s2 + $0xc8] sm:$0xff]
      %v353 = vld [vmem:[%s2 + $0xd0] sm:$0xff]
      %v354 = vld [vmem:[%s2 + $0xd8] sm:$0xff]
      %v355 = vld [vmem:[%s2 + $0xe0] sm:$0xff]
      %v356 = vld [vmem:[%s2 + $0xe8] sm:$0xff]
      %v357 = vld [vmem:[%s2 + $0xf0] sm:$0xff]
      %v358 = vld [vmem:[%s2 + $0xf8] sm:$0xff]
      %v359 = vld [vmem:[%s2 + $0x100] sm:$0xff]
      %v360 = vld [vmem:[%s2 + $0x108] sm:$0xff]
      %v361 = vld [vmem:[%s2 + $0x110] sm:$0xff]
      %v362 = vld [vmem:[%s2 + $0x118] sm:$0xff]
      %v363 = vld [vmem:[%s2 + $0x120] sm:$0xff]
      %v364 = vld [vmem:[%s2 + $0x128] sm:$0xff]
      %v365 = vld [vmem:[%s2 + $0x130] sm:$0xff]
      %v366 = vld [vmem:[%s2 + $0x138] sm:$0xff]
      %v367 = vld [vmem:[%s2 + $0x140] sm:$0xff]
      %v368 = vld [vmem:[%s2 + $0x148] sm:$0xff]
      %v369 = vld [vmem:[%s2 + $0x150] sm:$0xff]
      %v370 = vld [vmem:[%s2 + $0x158] sm:$0xff]
      %v371 = vld [vmem:[%s2 + $0x160] sm:$0xff]
      %v372 = vld [vmem:[%s2 + $0x168] sm:$0xff]
      %v373 = vld [vmem:[%s2 + $0x170] sm:$0xff]
      %v374 = vld [vmem:[%s2 + $0x178] sm:$0xff]
      %v375 = vld [vmem:[%s2 + $0x180] sm:$0xff]
      %v376 = vld [vmem:[%s2 + $0x188] sm:$0xff]
      %v377 = vld [vmem:[%s2 + $0x190] sm:$0xff]
      %v378 = vld [vmem:[%s2 + $0x198] sm:$0xff]
      %v379 = vld [vmem:[%s2 + $0x1a0] sm:$0xff]
      %v380 = vld [vmem:[%s2 + $0x1a8] sm:$0xff]
      %v381 = vld [vmem:[%s2 + $0x1b0] sm:$0xff]
      %v382 = vld [vmem:[%s2 + $0x1b8] sm:$0xff]
      %v383 = vld [vmem:[%s2 + $0x1c0] sm:$0xff]
      %v384 = vld [vmem:[%s2 + $0x1c8] sm:$0xff]
      %v385 = vld [vmem:[%s2 + $0x1d0] sm:$0xff]
      %v386 = vld [vmem:[%s2 + $0x1d8] sm:$0xff]
      %v387 = vld [vmem:[%s2 + $0x1e0] sm:$0xff]
      %v388 = vld [vmem:[%s2 + $0x1e8] sm:$0xff]
      %v389 = vld [vmem:[%s2 + $0x1f0] sm:$0xff]
      %v390 = vld [vmem:[%s2 + $0x1f8] sm:$0xff]
      %v391 = vand.u32 %v387, 4294901760
      %392 = vmatpush.msra.mxu0 %v391
      %v393 = vand.u32 %v383, 4294901760
      %394 = vmatpush.msra.mxu0 %v393
      %v395 = vand.u32 %v379, 4294901760
      %396 = vmatpush.msra.mxu0 %v395
      %v397 = vand.u32 %v375, 4294901760
      %398 = vmatpush.msra.mxu0 %v397
      %v399 = vand.u32 %v371, 4294901760
      %400 = vmatpush.msra.mxu0 %v399
      %v401 = vand.u32 %v367, 4294901760
      %402 = vmatpush.msra.mxu0 %v401
      %v403 = vand.u32 %v363, 4294901760
      %404 = vmatpush.msra.mxu0 %v403
      %v405 = vand.u32 %v359, 4294901760
      %406 = vmatpush.msra.mxu0 %v405
      %v407 = vand.u32 %v355, 4294901760
      %408 = vmatpush.msra.mxu0 %v407
      %v409 = vand.u32 %v351, 4294901760
      %410 = vmatpush.msra.mxu0 %v409
      %v411 = vand.u32 %v347, 4294901760
      %412 = vmatpush.msra.mxu0 %v411
      %v413 = vand.u32 %v343, 4294901760
      %414 = vmatpush.msra.mxu0 %v413
      %v415 = vand.u32 %v339, 4294901760
      %416 = vmatpush.msra.mxu0 %v415
      %v417 = vand.u32 %v335, 4294901760
      %418 = vmatpush.msra.mxu0 %v417
      %v419 = vand.u32 %v331, 4294901760
      %420 = vmatpush.msra.mxu0 %v419
      %v421 = vand.u32 %v327, 4294901760
      %422 = vmatpush.msra.mxu0 %v421
      %v423 = vand.u32 %v324, 4294901760
      %v424 = vsub.f32 %v324, %v423
      %v425 = vand.u32 %v424, 4294901760
      %v426 = vsub.f32 %v424, %v425
      %v427 = vand.u32 %v426, 4294901760
      %428 = vmatmul.f32.gmra.mxu0 %v427
      %v429 = vpop.f32.mrf.mxu0
      %v430 = vadd.f32 0.0, %v429
      %431 = vdwg.mxu0
      %v432 = vand.u32 %v387, 4294901760
      %v433 = vsub.f32 %v387, %v432
      %v434 = vand.u32 %v433, 4294901760
      %v435 = vsub.f32 %v433, %v434
      %v436 = vand.u32 %v435, 4294901760
      %437 = vmatpush.msra.mxu0 %v436
      %v438 = vand.u32 %v383, 4294901760
      %v439 = vsub.f32 %v383, %v438
      %v440 = vand.u32 %v439, 4294901760
      %v441 = vsub.f32 %v439, %v440
      %v442 = vand.u32 %v441, 4294901760
      %443 = vmatpush.msra.mxu0 %v442
      %v444 = vand.u32 %v379, 4294901760
      %v445 = vsub.f32 %v379, %v444
      %v446 = vand.u32 %v445, 4294901760
      %v447 = vsub.f32 %v445, %v446
      %v448 = vand.u32 %v447, 4294901760
      %449 = vmatpush.msra.mxu0 %v448
      %v450 = vand.u32 %v375, 4294901760
      %v451 = vsub.f32 %v375, %v450
      %v452 = vand.u32 %v451, 4294901760
      %v453 = vsub.f32 %v451, %v452
      %v454 = vand.u32 %v453, 4294901760
      %455 = vmatpush.msra.mxu0 %v454
      %v456 = vand.u32 %v371, 4294901760
      %v457 = vsub.f32 %v371, %v456
      %v458 = vand.u32 %v457, 4294901760
      %v459 = vsub.f32 %v457, %v458
      %v460 = vand.u32 %v459, 4294901760
      %461 = vmatpush.msra.mxu0 %v460
      %v462 = vand.u32 %v367, 4294901760
      %v463 = vsub.f32 %v367, %v462
      %v464 = vand.u32 %v463, 4294901760
      %v465 = vsub.f32 %v463, %v464
      %v466 = vand.u32 %v465, 4294901760
      %467 = vmatpush.msra.mxu0 %v466
      %v468 = vand.u32 %v363, 4294901760
      %v469 = vsub.f32 %v363, %v468
      %v470 = vand.u32 %v469, 4294901760
      %v471 = vsub.f32 %v469, %v470
      %v472 = vand.u32 %v471, 4294901760
      %473 = vmatpush.msra.mxu0 %v472
      %v474 = vand.u32 %v359, 4294901760
      %v475 = vsub.f32 %v359, %v474
      %v476 = vand.u32 %v475, 4294901760
      %v477 = vsub.f32 %v475, %v476
      %v478 = vand.u32 %v477, 4294901760
      %479 = vmatpush.msra.mxu0 %v478
      %v480 = vand.u32 %v355, 4294901760
      %v481 = vsub.f32 %v355, %v480
      %v482 = vand.u32 %v481, 4294901760
      %v483 = vsub.f32 %v481, %v482
      %v484 = vand.u32 %v483, 4294901760
      %485 = vmatpush.msra.mxu0 %v484
      %v486 = vand.u32 %v351, 4294901760
      %v487 = vsub.f32 %v351, %v486
      %v488 = vand.u32 %v487, 4294901760
      %v489 = vsub.f32 %v487, %v488
      %v490 = vand.u32 %v489, 4294901760
      %491 = vmatpush.msra.mxu0 %v490
      %v492 = vand.u32 %v347, 4294901760
      %v493 = vsub.f32 %v347, %v492
      %v494 = vand.u32 %v493, 4294901760
      %v495 = vsub.f32 %v493, %v494
      %v496 = vand.u32 %v495, 4294901760
      %497 = vmatpush.msra.mxu0 %v496
      %v498 = vand.u32 %v343, 4294901760
      %v499 = vsub.f32 %v343, %v498
      %v500 = vand.u32 %v499, 4294901760
      %v501 = vsub.f32 %v499, %v500
      %v502 = vand.u32 %v501, 4294901760
      %503 = vmatpush.msra.mxu0 %v502
      %v504 = vand.u32 %v339, 4294901760
      %v505 = vsub.f32 %v339, %v504
      %v506 = vand.u32 %v505, 4294901760
      %v507 = vsub.f32 %v505, %v506
      %v508 = vand.u32 %v507, 4294901760
      %509 = vmatpush.msra.mxu0 %v508
      %v510 = vand.u32 %v335, 4294901760
      %v511 = vsub.f32 %v335, %v510
      %v512 = vand.u32 %v511, 4294901760
      %v513 = vsub.f32 %v511, %v512
      %v514 = vand.u32 %v513, 4294901760
      %515 = vmatpush.msra.mxu0 %v514
      %v516 = vand.u32 %v331, 4294901760
      %v517 = vsub.f32 %v331, %v516
      %v518 = vand.u32 %v517, 4294901760
      %v519 = vsub.f32 %v517, %v518
      %v520 = vand.u32 %v519, 4294901760
      %521 = vmatpush.msra.mxu0 %v520
      %v522 = vand.u32 %v327, 4294901760
      %v523 = vsub.f32 %v327, %v522
      %v524 = vand.u32 %v523, 4294901760
      %v525 = vsub.f32 %v523, %v524
      %v526 = vand.u32 %v525, 4294901760
      %527 = vmatpush.msra.mxu0 %v526
      %v528 = vand.u32 %v324, 4294901760
      %529 = vmatmul.f32.gmra.mxu0 %v528
      %v530 = vpop.f32.mrf.mxu0
      %v531 = vadd.f32 %v430, %v530
      %532 = vdwg.mxu0
      %v533 = vand.u32 %v387, 4294901760
      %v534 = vsub.f32 %v387, %v533
      %535 = vmatpush.msra.mxu0 %v534
      %v536 = vand.u32 %v383, 4294901760
      %v537 = vsub.f32 %v383, %v536
      %538 = vmatpush.msra.mxu0 %v537
      %v539 = vand.u32 %v379, 4294901760
      %v540 = vsub.f32 %v379, %v539
      %541 = vmatpush.msra.mxu0 %v540
      %v542 = vand.u32 %v375, 4294901760
      %v543 = vsub.f32 %v375, %v542
      %544 = vmatpush.msra.mxu0 %v543
      %v545 = vand.u32 %v371, 4294901760
      %v546 = vsub.f32 %v371, %v545
      %547 = vmatpush.msra.mxu0 %v546
      %v548 = vand.u32 %v367, 4294901760
      %v549 = vsub.f32 %v367, %v548
      %550 = vmatpush.msra.mxu0 %v549
      %v551 = vand.u32 %v363, 4294901760
      %v552 = vsub.f32 %v363, %v551
      %553 = vmatpush.msra.mxu0 %v552
      %v554 = vand.u32 %v359, 4294901760
      %v555 = vsub.f32 %v359, %v554
      %556 = vmatpush.msra.mxu0 %v555
      %v557 = vand.u32 %v355, 4294901760
      %v558 = vsub.f32 %v355, %v557
      %559 = vmatpush.msra.mxu0 %v558
      %v560 = vand.u32 %v351, 4294901760
      %v561 = vsub.f32 %v351, %v560
      %562 = vmatpush.msra.mxu0 %v561
      %v563 = vand.u32 %v347, 4294901760
      %v564 = vsub.f32 %v347, %v563
      %565 = vmatpush.msra.mxu0 %v564
      %v566 = vand.u32 %v343, 4294901760
      %v567 = vsub.f32 %v343, %v566
      %568 = vmatpush.msra.mxu0 %v567
      %v569 = vand.u32 %v339, 4294901760
      %v570 = vsub.f32 %v339, %v569
      %571 = vmatpush.msra.mxu0 %v570
      %v572 = vand.u32 %v335, 4294901760
      %v573 = vsub.f32 %v335, %v572
      %574 = vmatpush.msra.mxu0 %v573
      %v575 = vand.u32 %v331, 4294901760
      %v576 = vsub.f32 %v331, %v575
      %577 = vmatpush.msra.mxu0 %v576
      %v578 = vand.u32 %v327, 4294901760
      %v579 = vsub.f32 %v327, %v578
      %580 = vmatpush.msra.mxu0 %v579
      %v581 = vand.u32 %v324, 4294901760
      %v582 = vsub.f32 %v324, %v581
      %583 = vmatmul.f32.gmra.mxu0 %v582
      %v584 = vpop.f32.mrf.mxu0
      %v585 = vadd.f32 %v531, %v584
      %586 = vdwg.mxu0
      %v587 = vand.u32 %v387, 4294901760
      %588 = vmatpush.msra.mxu0 %v587
      %v589 = vand.u32 %v383, 4294901760
      %590 = vmatpush.msra.mxu0 %v589
      %v591 = vand.u32 %v379, 4294901760
      %592 = vmatpush.msra.mxu0 %v591
      %v593 = vand.u32 %v375, 4294901760
      %594 = vmatpush.msra.mxu0 %v593
      %v595 = vand.u32 %v371, 4294901760
      %596 = vmatpush.msra.mxu0 %v595
      %v597 = vand.u32 %v367, 4294901760
      %598 = vmatpush.msra.mxu0 %v597
      %v599 = vand.u32 %v363, 4294901760
      %600 = vmatpush.msra.mxu0 %v599
      %v601 = vand.u32 %v359, 4294901760
      %602 = vmatpush.msra.mxu0 %v601
      %v603 = vand.u32 %v355, 4294901760
      %604 = vmatpush.msra.mxu0 %v603
      %v605 = vand.u32 %v351, 4294901760
      %606 = vmatpush.msra.mxu0 %v605
      %v607 = vand.u32 %v347, 4294901760
      %608 = vmatpush.msra.mxu0 %v607
      %v609 = vand.u32 %v343, 4294901760
      %610 = vmatpush.msra.mxu0 %v609
      %v611 = vand.u32 %v339, 4294901760
      %612 = vmatpush.msra.mxu0 %v611
      %v613 = vand.u32 %v335, 4294901760
      %614 = vmatpush.msra.mxu0 %v613
      %v615 = vand.u32 %v331, 4294901760
      %616 = vmatpush.msra.mxu0 %v615
      %v617 = vand.u32 %v327, 4294901760
      %618 = vmatpush.msra.mxu0 %v617
      %v619 = vand.u32 %v324, 4294901760
      %v620 = vsub.f32 %v324, %v619
      %v621 = vand.u32 %v620, 4294901760
      %622 = vmatmul.f32.gmra.mxu0 %v621
      %v623 = vpop.f32.mrf.mxu0
      %v624 = vadd.f32 %v585, %v623
      %625 = vdwg.mxu0
      %v626 = vand.u32 %v387, 4294901760
      %v627 = vsub.f32 %v387, %v626
      %v628 = vand.u32 %v627, 4294901760
      %629 = vmatpush.msra.mxu0 %v628
      %v630 = vand.u32 %v383, 4294901760
      %v631 = vsub.f32 %v383, %v630
      %v632 = vand.u32 %v631, 4294901760
      %633 = vmatpush.msra.mxu0 %v632
      %v634 = vand.u32 %v379, 4294901760
      %v635 = vsub.f32 %v379, %v634
      %v636 = vand.u32 %v635, 4294901760
      %637 = vmatpush.msra.mxu0 %v636
      %v638 = vand.u32 %v375, 4294901760
      %v639 = vsub.f32 %v375, %v638
      %v640 = vand.u32 %v639, 4294901760
      %641 = vmatpush.msra.mxu0 %v640
      %v642 = vand.u32 %v371, 4294901760
      %v643 = vsub.f32 %v371, %v642
      %v644 = vand.u32 %v643, 4294901760
      %645 = vmatpush.msra.mxu0 %v644
      %v646 = vand.u32 %v367, 4294901760
      %v647 = vsub.f32 %v367, %v646
      %v648 = vand.u32 %v647, 4294901760
      %649 = vmatpush.msra.mxu0 %v648
      %v650 = vand.u32 %v363, 4294901760
      %v651 = vsub.f32 %v363, %v650
      %v652 = vand.u32 %v651, 4294901760
      %653 = vmatpush.msra.mxu0 %v652
      %v654 = vand.u32 %v359, 4294901760
      %v655 = vsub.f32 %v359, %v654
      %v656 = vand.u32 %v655, 4294901760
      %657 = vmatpush.msra.mxu0 %v656
      %v658 = vand.u32 %v355, 4294901760
      %v659 = vsub.f32 %v355, %v658
      %v660 = vand.u32 %v659, 4294901760
      %661 = vmatpush.msra.mxu0 %v660
      %v662 = vand.u32 %v351, 4294901760
      %v663 = vsub.f32 %v351, %v662
      %v664 = vand.u32 %v663, 4294901760
      %665 = vmatpush.msra.mxu0 %v664
      %v666 = vand.u32 %v347, 4294901760
      %v667 = vsub.f32 %v347, %v666
      %v668 = vand.u32 %v667, 4294901760
      %669 = vmatpush.msra.mxu0 %v668
      %v670 = vand.u32 %v343, 4294901760
      %v671 = vsub.f32 %v343, %v670
      %v672 = vand.u32 %v671, 4294901760
      %673 = vmatpush.msra.mxu0 %v672
      %v674 = vand.u32 %v339, 4294901760
      %v675 = vsub.f32 %v339, %v674
      %v676 = vand.u32 %v675, 4294901760
      %677 = vmatpush.msra.mxu0 %v676
      %v678 = vand.u32 %v335, 4294901760
      %v679 = vsub.f32 %v335, %v678
      %v680 = vand.u32 %v679, 4294901760
      %681 = vmatpush.msra.mxu0 %v680
      %v682 = vand.u32 %v331, 4294901760
      %v683 = vsub.f32 %v331, %v682
      %v684 = vand.u32 %v683, 4294901760
      %685 = vmatpush.msra.mxu0 %v684
      %v686 = vand.u32 %v327, 4294901760
      %v687 = vsub.f32 %v327, %v686
      %v688 = vand.u32 %v687, 4294901760
      %689 = vmatpush.msra.mxu0 %v688
      %v690 = vand.u32 %v324, 4294901760
      %691 = vmatmul.f32.gmra.mxu0 %v690
      %v692 = vpop.f32.mrf.mxu0
      %v693 = vadd.f32 %v624, %v692
      %694 = vdwg.mxu0
      %v695 = vand.u32 %v387, 4294901760
      %696 = vmatpush.msra.mxu0 %v695
      %v697 = vand.u32 %v383, 4294901760
      %698 = vmatpush.msra.mxu0 %v697
      %v699 = vand.u32 %v379, 4294901760
      %700 = vmatpush.msra.mxu0 %v699
      %v701 = vand.u32 %v375, 4294901760
      %702 = vmatpush.msra.mxu0 %v701
      %v703 = vand.u32 %v371, 4294901760
      %704 = vmatpush.msra.mxu0 %v703
      %v705 = vand.u32 %v367, 4294901760
      %706 = vmatpush.msra.mxu0 %v705
      %v707 = vand.u32 %v363, 4294901760
      %708 = vmatpush.msra.mxu0 %v707
      %v709 = vand.u32 %v359, 4294901760
      %710 = vmatpush.msra.mxu0 %v709
      %v711 = vand.u32 %v355, 4294901760
      %712 = vmatpush.msra.mxu0 %v711
      %v713 = vand.u32 %v351, 4294901760
      %714 = vmatpush.msra.mxu0 %v713
      %v715 = vand.u32 %v347, 4294901760
      %716 = vmatpush.msra.mxu0 %v715
      %v717 = vand.u32 %v343, 4294901760
      %718 = vmatpush.msra.mxu0 %v717
      %v719 = vand.u32 %v339, 4294901760
      %720 = vmatpush.msra.mxu0 %v719
      %v721 = vand.u32 %v335, 4294901760
      %722 = vmatpush.msra.mxu0 %v721
      %v723 = vand.u32 %v331, 4294901760
      %724 = vmatpush.msra.mxu0 %v723
      %v725 = vand.u32 %v327, 4294901760
      %726 = vmatpush.msra.mxu0 %v725
      %v727 = vand.u32 %v324, 4294901760
      %728 = vmatmul.f32.gmra.mxu0 %v727
      %v729 = vpop.f32.mrf.mxu0
      %v730 = vadd.f32 %v693, %v729
      %731 = vdwg.mxu0
      %v732 = vand.u32 %v388, 4294901760
      %733 = vmatpush.msra.mxu0 %v732
      %v734 = vand.u32 %v384, 4294901760
      %735 = vmatpush.msra.mxu0 %v734
      %v736 = vand.u32 %v380, 4294901760
      %737 = vmatpush.msra.mxu0 %v736
      %v738 = vand.u32 %v376, 4294901760
      %739 = vmatpush.msra.mxu0 %v738
      %v740 = vand.u32 %v372, 4294901760
      %741 = vmatpush.msra.mxu0 %v740
      %v742 = vand.u32 %v368, 4294901760
      %743 = vmatpush.msra.mxu0 %v742
      %v744 = vand.u32 %v364, 4294901760
      %745 = vmatpush.msra.mxu0 %v744
      %v746 = vand.u32 %v360, 4294901760
      %747 = vmatpush.msra.mxu0 %v746
      %v748 = vand.u32 %v356, 4294901760
      %749 = vmatpush.msra.mxu0 %v748
      %v750 = vand.u32 %v352, 4294901760
      %751 = vmatpush.msra.mxu0 %v750
      %v752 = vand.u32 %v348, 4294901760
      %753 = vmatpush.msra.mxu0 %v752
      %v754 = vand.u32 %v344, 4294901760
      %755 = vmatpush.msra.mxu0 %v754
      %v756 = vand.u32 %v340, 4294901760
      %757 = vmatpush.msra.mxu0 %v756
      %v758 = vand.u32 %v336, 4294901760
      %759 = vmatpush.msra.mxu0 %v758
      %v760 = vand.u32 %v332, 4294901760
      %761 = vmatpush.msra.mxu0 %v760
      %v762 = vand.u32 %v328, 4294901760
      %763 = vmatpush.msra.mxu0 %v762
      %v764 = vand.u32 %v324, 4294901760
      %v765 = vsub.f32 %v324, %v764
      %v766 = vand.u32 %v765, 4294901760
      %v767 = vsub.f32 %v765, %v766
      %v768 = vand.u32 %v767, 4294901760
      %769 = vmatmul.f32.gmra.mxu0 %v768
      %v770 = vpop.f32.mrf.mxu0
      %v771 = vadd.f32 0.0, %v770
      %772 = vdwg.mxu0
      %v773 = vand.u32 %v388, 4294901760
      %v774 = vsub.f32 %v388, %v773
      %v775 = vand.u32 %v774, 4294901760
      %v776 = vsub.f32 %v774, %v775
      %v777 = vand.u32 %v776, 4294901760
      %778 = vmatpush.msra.mxu0 %v777
      %v779 = vand.u32 %v384, 4294901760
      %v780 = vsub.f32 %v384, %v779
      %v781 = vand.u32 %v780, 4294901760
      %v782 = vsub.f32 %v780, %v781
      %v783 = vand.u32 %v782, 4294901760
      %784 = vmatpush.msra.mxu0 %v783
      %v785 = vand.u32 %v380, 4294901760
      %v786 = vsub.f32 %v380, %v785
      %v787 = vand.u32 %v786, 4294901760
      %v788 = vsub.f32 %v786, %v787
      %v789 = vand.u32 %v788, 4294901760
      %790 = vmatpush.msra.mxu0 %v789
      %v791 = vand.u32 %v376, 4294901760
      %v792 = vsub.f32 %v376, %v791
      %v793 = vand.u32 %v792, 4294901760
      %v794 = vsub.f32 %v792, %v793
      %v795 = vand.u32 %v794, 4294901760
      %796 = vmatpush.msra.mxu0 %v795
      %v797 = vand.u32 %v372, 4294901760
      %v798 = vsub.f32 %v372, %v797
      %v799 = vand.u32 %v798, 4294901760
      %v800 = vsub.f32 %v798, %v799
      %v801 = vand.u32 %v800, 4294901760
      %802 = vmatpush.msra.mxu0 %v801
      %v803 = vand.u32 %v368, 4294901760
      %v804 = vsub.f32 %v368, %v803
      %v805 = vand.u32 %v804, 4294901760
      %v806 = vsub.f32 %v804, %v805
      %v807 = vand.u32 %v806, 4294901760
      %808 = vmatpush.msra.mxu0 %v807
      %v809 = vand.u32 %v364, 4294901760
      %v810 = vsub.f32 %v364, %v809
      %v811 = vand.u32 %v810, 4294901760
      %v812 = vsub.f32 %v810, %v811
      %v813 = vand.u32 %v812, 4294901760
      %814 = vmatpush.msra.mxu0 %v813
      %v815 = vand.u32 %v360, 4294901760
      %v816 = vsub.f32 %v360, %v815
      %v817 = vand.u32 %v816, 4294901760
      %v818 = vsub.f32 %v816, %v817
      %v819 = vand.u32 %v818, 4294901760
      %820 = vmatpush.msra.mxu0 %v819
      %v821 = vand.u32 %v356, 4294901760
      %v822 = vsub.f32 %v356, %v821
      %v823 = vand.u32 %v822, 4294901760
      %v824 = vsub.f32 %v822, %v823
      %v825 = vand.u32 %v824, 4294901760
      %826 = vmatpush.msra.mxu0 %v825
      %v827 = vand.u32 %v352, 4294901760
      %v828 = vsub.f32 %v352, %v827
      %v829 = vand.u32 %v828, 4294901760
      %v830 = vsub.f32 %v828, %v829
      %v831 = vand.u32 %v830, 4294901760
      %832 = vmatpush.msra.mxu0 %v831
      %v833 = vand.u32 %v348, 4294901760
      %v834 = vsub.f32 %v348, %v833
      %v835 = vand.u32 %v834, 4294901760
      %v836 = vsub.f32 %v834, %v835
      %v837 = vand.u32 %v836, 4294901760
      %838 = vmatpush.msra.mxu0 %v837
      %v839 = vand.u32 %v344, 4294901760
      %v840 = vsub.f32 %v344, %v839
      %v841 = vand.u32 %v840, 4294901760
      %v842 = vsub.f32 %v840, %v841
      %v843 = vand.u32 %v842, 4294901760
      %844 = vmatpush.msra.mxu0 %v843
      %v845 = vand.u32 %v340, 4294901760
      %v846 = vsub.f32 %v340, %v845
      %v847 = vand.u32 %v846, 4294901760
      %v848 = vsub.f32 %v846, %v847
      %v849 = vand.u32 %v848, 4294901760
      %850 = vmatpush.msra.mxu0 %v849
      %v851 = vand.u32 %v336, 4294901760
      %v852 = vsub.f32 %v336, %v851
      %v853 = vand.u32 %v852, 4294901760
      %v854 = vsub.f32 %v852, %v853
      %v855 = vand.u32 %v854, 4294901760
      %856 = vmatpush.msra.mxu0 %v855
      %v857 = vand.u32 %v332, 4294901760
      %v858 = vsub.f32 %v332, %v857
      %v859 = vand.u32 %v858, 4294901760
      %v860 = vsub.f32 %v858, %v859
      %v861 = vand.u32 %v860, 4294901760
      %862 = vmatpush.msra.mxu0 %v861
      %v863 = vand.u32 %v328, 4294901760
      %v864 = vsub.f32 %v328, %v863
      %v865 = vand.u32 %v864, 4294901760
      %v866 = vsub.f32 %v864, %v865
      %v867 = vand.u32 %v866, 4294901760
      %868 = vmatpush.msra.mxu0 %v867
      %v869 = vand.u32 %v324, 4294901760
      %870 = vmatmul.f32.gmra.mxu0 %v869
      %v871 = vpop.f32.mrf.mxu0
      %v872 = vadd.f32 %v771, %v871
      %873 = vdwg.mxu0
      %v874 = vand.u32 %v388, 4294901760
      %v875 = vsub.f32 %v388, %v874
      %876 = vmatpush.msra.mxu0 %v875
      %v877 = vand.u32 %v384, 4294901760
      %v878 = vsub.f32 %v384, %v877
      %879 = vmatpush.msra.mxu0 %v878
      %v880 = vand.u32 %v380, 4294901760
      %v881 = vsub.f32 %v380, %v880
      %882 = vmatpush.msra.mxu0 %v881
      %v883 = vand.u32 %v376, 4294901760
      %v884 = vsub.f32 %v376, %v883
      %885 = vmatpush.msra.mxu0 %v884
      %v886 = vand.u32 %v372, 4294901760
      %v887 = vsub.f32 %v372, %v886
      %888 = vmatpush.msra.mxu0 %v887
      %v889 = vand.u32 %v368, 4294901760
      %v890 = vsub.f32 %v368, %v889
      %891 = vmatpush.msra.mxu0 %v890
      %v892 = vand.u32 %v364, 4294901760
      %v893 = vsub.f32 %v364, %v892
      %894 = vmatpush.msra.mxu0 %v893
      %v895 = vand.u32 %v360, 4294901760
      %v896 = vsub.f32 %v360, %v895
      %897 = vmatpush.msra.mxu0 %v896
      %v898 = vand.u32 %v356, 4294901760
      %v899 = vsub.f32 %v356, %v898
      %900 = vmatpush.msra.mxu0 %v899
      %v901 = vand.u32 %v352, 4294901760
      %v902 = vsub.f32 %v352, %v901
      %903 = vmatpush.msra.mxu0 %v902
      %v904 = vand.u32 %v348, 4294901760
      %v905 = vsub.f32 %v348, %v904
      %906 = vmatpush.msra.mxu0 %v905
      %v907 = vand.u32 %v344, 4294901760
      %v908 = vsub.f32 %v344, %v907
      %909 = vmatpush.msra.mxu0 %v908
      %v910 = vand.u32 %v340, 4294901760
      %v911 = vsub.f32 %v340, %v910
      %912 = vmatpush.msra.mxu0 %v911
      %v913 = vand.u32 %v336, 4294901760
      %v914 = vsub.f32 %v336, %v913
      %915 = vmatpush.msra.mxu0 %v914
      %v916 = vand.u32 %v332, 4294901760
      %v917 = vsub.f32 %v332, %v916
      %918 = vmatpush.msra.mxu0 %v917
      %v919 = vand.u32 %v328, 4294901760
      %v920 = vsub.f32 %v328, %v919
      %921 = vmatpush.msra.mxu0 %v920
      %v922 = vand.u32 %v324, 4294901760
      %v923 = vsub.f32 %v324, %v922
      %924 = vmatmul.f32.gmra.mxu0 %v923
      %v925 = vpop.f32.mrf.mxu0
      %v926 = vadd.f32 %v872, %v925
      %927 = vdwg.mxu0
      %v928 = vand.u32 %v388, 4294901760
      %929 = vmatpush.msra.mxu0 %v928
      %v930 = vand.u32 %v384, 4294901760
      %931 = vmatpush.msra.mxu0 %v930
      %v932 = vand.u32 %v380, 4294901760
      %933 = vmatpush.msra.mxu0 %v932
      %v934 = vand.u32 %v376, 4294901760
      %935 = vmatpush.msra.mxu0 %v934
      %v936 = vand.u32 %v372, 4294901760
      %937 = vmatpush.msra.mxu0 %v936
      %v938 = vand.u32 %v368, 4294901760
      %939 = vmatpush.msra.mxu0 %v938
      %v940 = vand.u32 %v364, 4294901760
      %941 = vmatpush.msra.mxu0 %v940
      %v942 = vand.u32 %v360, 4294901760
      %943 = vmatpush.msra.mxu0 %v942
      %v944 = vand.u32 %v356, 4294901760
      %945 = vmatpush.msra.mxu0 %v944
      %v946 = vand.u32 %v352, 4294901760
      %947 = vmatpush.msra.mxu0 %v946
      %v948 = vand.u32 %v348, 4294901760
      %949 = vmatpush.msra.mxu0 %v948
      %v950 = vand.u32 %v344, 4294901760
      %951 = vmatpush.msra.mxu0 %v950
      %v952 = vand.u32 %v340, 4294901760
      %953 = vmatpush.msra.mxu0 %v952
      %v954 = vand.u32 %v336, 4294901760
      %955 = vmatpush.msra.mxu0 %v954
      %v956 = vand.u32 %v332, 4294901760
      %957 = vmatpush.msra.mxu0 %v956
      %v958 = vand.u32 %v328, 4294901760
      %959 = vmatpush.msra.mxu0 %v958
      %v960 = vand.u32 %v324, 4294901760
      %v961 = vsub.f32 %v324, %v960
      %v962 = vand.u32 %v961, 4294901760
      %963 = vmatmul.f32.gmra.mxu0 %v962
      %v964 = vpop.f32.mrf.mxu0
      %v965 = vadd.f32 %v926, %v964
      %966 = vdwg.mxu0
      %v967 = vand.u32 %v388, 4294901760
      %v968 = vsub.f32 %v388, %v967
      %v969 = vand.u32 %v968, 4294901760
      %970 = vmatpush.msra.mxu0 %v969
      %v971 = vand.u32 %v384, 4294901760
      %v972 = vsub.f32 %v384, %v971
      %v973 = vand.u32 %v972, 4294901760
      %974 = vmatpush.msra.mxu0 %v973
      %v975 = vand.u32 %v380, 4294901760
      %v976 = vsub.f32 %v380, %v975
      %v977 = vand.u32 %v976, 4294901760
      %978 = vmatpush.msra.mxu0 %v977
      %v979 = vand.u32 %v376, 4294901760
      %v980 = vsub.f32 %v376, %v979
      %v981 = vand.u32 %v980, 4294901760
      %982 = vmatpush.msra.mxu0 %v981
      %v983 = vand.u32 %v372, 4294901760
      %v984 = vsub.f32 %v372, %v983
      %v985 = vand.u32 %v984, 4294901760
      %986 = vmatpush.msra.mxu0 %v985
      %v987 = vand.u32 %v368, 4294901760
      %v988 = vsub.f32 %v368, %v987
      %v989 = vand.u32 %v988, 4294901760
      %990 = vmatpush.msra.mxu0 %v989
      %v991 = vand.u32 %v364, 4294901760
      %v992 = vsub.f32 %v364, %v991
      %v993 = vand.u32 %v992, 4294901760
      %994 = vmatpush.msra.mxu0 %v993
      %v995 = vand.u32 %v360, 4294901760
      %v996 = vsub.f32 %v360, %v995
      %v997 = vand.u32 %v996, 4294901760
      %998 = vmatpush.msra.mxu0 %v997
      %v999 = vand.u32 %v356, 4294901760
      %v1000 = vsub.f32 %v356, %v999
      %v1001 = vand.u32 %v1000, 4294901760
      %1002 = vmatpush.msra.mxu0 %v1001
      %v1003 = vand.u32 %v352, 4294901760
      %v1004 = vsub.f32 %v352, %v1003
      %v1005 = vand.u32 %v1004, 4294901760
      %1006 = vmatpush.msra.mxu0 %v1005
      %v1007 = vand.u32 %v348, 4294901760
      %v1008 = vsub.f32 %v348, %v1007
      %v1009 = vand.u32 %v1008, 4294901760
      %1010 = vmatpush.msra.mxu0 %v1009
      %v1011 = vand.u32 %v344, 4294901760
      %v1012 = vsub.f32 %v344, %v1011
      %v1013 = vand.u32 %v1012, 4294901760
      %1014 = vmatpush.msra.mxu0 %v1013
      %v1015 = vand.u32 %v340, 4294901760
      %v1016 = vsub.f32 %v340, %v1015
      %v1017 = vand.u32 %v1016, 4294901760
      %1018 = vmatpush.msra.mxu0 %v1017
      %v1019 = vand.u32 %v336, 4294901760
      %v1020 = vsub.f32 %v336, %v1019
      %v1021 = vand.u32 %v1020, 4294901760
      %1022 = vmatpush.msra.mxu0 %v1021
      %v1023 = vand.u32 %v332, 4294901760
      %v1024 = vsub.f32 %v332, %v1023
      %v1025 = vand.u32 %v1024, 4294901760
      %1026 = vmatpush.msra.mxu0 %v1025
      %v1027 = vand.u32 %v328, 4294901760
      %v1028 = vsub.f32 %v328, %v1027
      %v1029 = vand.u32 %v1028, 4294901760
      %1030 = vmatpush.msra.mxu0 %v1029
      %v1031 = vand.u32 %v324, 4294901760
      %1032 = vmatmul.f32.gmra.mxu0 %v1031
      %v1033 = vpop.f32.mrf.mxu0
      %v1034 = vadd.f32 %v965, %v1033
      %1035 = vdwg.mxu0
      %v1036 = vand.u32 %v388, 4294901760
      %1037 = vmatpush.msra.mxu0 %v1036
      %v1038 = vand.u32 %v384, 4294901760
      %1039 = vmatpush.msra.mxu0 %v1038
      %v1040 = vand.u32 %v380, 4294901760
      %1041 = vmatpush.msra.mxu0 %v1040
      %v1042 = vand.u32 %v376, 4294901760
      %1043 = vmatpush.msra.mxu0 %v1042
      %v1044 = vand.u32 %v372, 4294901760
      %1045 = vmatpush.msra.mxu0 %v1044
      %v1046 = vand.u32 %v368, 4294901760
      %1047 = vmatpush.msra.mxu0 %v1046
      %v1048 = vand.u32 %v364, 4294901760
      %1049 = vmatpush.msra.mxu0 %v1048
      %v1050 = vand.u32 %v360, 4294901760
      %1051 = vmatpush.msra.mxu0 %v1050
      %v1052 = vand.u32 %v356, 4294901760
      %1053 = vmatpush.msra.mxu0 %v1052
      %v1054 = vand.u32 %v352, 4294901760
      %1055 = vmatpush.msra.mxu0 %v1054
      %v1056 = vand.u32 %v348, 4294901760
      %1057 = vmatpush.msra.mxu0 %v1056
      %v1058 = vand.u32 %v344, 4294901760
      %1059 = vmatpush.msra.mxu0 %v1058
      %v1060 = vand.u32 %v340, 4294901760
      %1061 = vmatpush.msra.mxu0 %v1060
      %v1062 = vand.u32 %v336, 4294901760
      %1063 = vmatpush.msra.mxu0 %v1062
      %v1064 = vand.u32 %v332, 4294901760
      %1065 = vmatpush.msra.mxu0 %v1064
      %v1066 = vand.u32 %v328, 4294901760
      %1067 = vmatpush.msra.mxu0 %v1066
      %v1068 = vand.u32 %v324, 4294901760
      %1069 = vmatmul.f32.gmra.mxu0 %v1068
      %v1070 = vpop.f32.mrf.mxu0
      %v1071 = vadd.f32 %v1034, %v1070
      %1072 = vdwg.mxu0
      %v1073 = vand.u32 %v389, 4294901760
      %1074 = vmatpush.msra.mxu0 %v1073
      %v1075 = vand.u32 %v385, 4294901760
      %1076 = vmatpush.msra.mxu0 %v1075
      %v1077 = vand.u32 %v381, 4294901760
      %1078 = vmatpush.msra.mxu0 %v1077
      %v1079 = vand.u32 %v377, 4294901760
      %1080 = vmatpush.msra.mxu0 %v1079
      %v1081 = vand.u32 %v373, 4294901760
      %1082 = vmatpush.msra.mxu0 %v1081
      %v1083 = vand.u32 %v369, 4294901760
      %1084 = vmatpush.msra.mxu0 %v1083
      %v1085 = vand.u32 %v365, 4294901760
      %1086 = vmatpush.msra.mxu0 %v1085
      %v1087 = vand.u32 %v361, 4294901760
      %1088 = vmatpush.msra.mxu0 %v1087
      %v1089 = vand.u32 %v357, 4294901760
      %1090 = vmatpush.msra.mxu0 %v1089
      %v1091 = vand.u32 %v353, 4294901760
      %1092 = vmatpush.msra.mxu0 %v1091
      %v1093 = vand.u32 %v349, 4294901760
      %1094 = vmatpush.msra.mxu0 %v1093
      %v1095 = vand.u32 %v345, 4294901760
      %1096 = vmatpush.msra.mxu0 %v1095
      %v1097 = vand.u32 %v341, 4294901760
      %1098 = vmatpush.msra.mxu0 %v1097
      %v1099 = vand.u32 %v337, 4294901760
      %1100 = vmatpush.msra.mxu0 %v1099
      %v1101 = vand.u32 %v333, 4294901760
      %1102 = vmatpush.msra.mxu0 %v1101
      %v1103 = vand.u32 %v329, 4294901760
      %1104 = vmatpush.msra.mxu0 %v1103
      %v1105 = vand.u32 %v324, 4294901760
      %v1106 = vsub.f32 %v324, %v1105
      %v1107 = vand.u32 %v1106, 4294901760
      %v1108 = vsub.f32 %v1106, %v1107
      %v1109 = vand.u32 %v1108, 4294901760
      %1110 = vmatmul.f32.gmra.mxu0 %v1109
      %v1111 = vpop.f32.mrf.mxu0
      %v1112 = vadd.f32 0.0, %v1111
      %1113 = vdwg.mxu0
      %v1114 = vand.u32 %v389, 4294901760
      %v1115 = vsub.f32 %v389, %v1114
      %v1116 = vand.u32 %v1115, 4294901760
      %v1117 = vsub.f32 %v1115, %v1116
      %v1118 = vand.u32 %v1117, 4294901760
      %1119 = vmatpush.msra.mxu0 %v1118
      %v1120 = vand.u32 %v385, 4294901760
      %v1121 = vsub.f32 %v385, %v1120
      %v1122 = vand.u32 %v1121, 4294901760
      %v1123 = vsub.f32 %v1121, %v1122
      %v1124 = vand.u32 %v1123, 4294901760
      %1125 = vmatpush.msra.mxu0 %v1124
      %v1126 = vand.u32 %v381, 4294901760
      %v1127 = vsub.f32 %v381, %v1126
      %v1128 = vand.u32 %v1127, 4294901760
      %v1129 = vsub.f32 %v1127, %v1128
      %v1130 = vand.u32 %v1129, 4294901760
      %1131 = vmatpush.msra.mxu0 %v1130
      %v1132 = vand.u32 %v377, 4294901760
      %v1133 = vsub.f32 %v377, %v1132
      %v1134 = vand.u32 %v1133, 4294901760
      %v1135 = vsub.f32 %v1133, %v1134
      %v1136 = vand.u32 %v1135, 4294901760
      %1137 = vmatpush.msra.mxu0 %v1136
      %v1138 = vand.u32 %v373, 4294901760
      %v1139 = vsub.f32 %v373, %v1138
      %v1140 = vand.u32 %v1139, 4294901760
      %v1141 = vsub.f32 %v1139, %v1140
      %v1142 = vand.u32 %v1141, 4294901760
      %1143 = vmatpush.msra.mxu0 %v1142
      %v1144 = vand.u32 %v369, 4294901760
      %v1145 = vsub.f32 %v369, %v1144
      %v1146 = vand.u32 %v1145, 4294901760
      %v1147 = vsub.f32 %v1145, %v1146
      %v1148 = vand.u32 %v1147, 4294901760
      %1149 = vmatpush.msra.mxu0 %v1148
      %v1150 = vand.u32 %v365, 4294901760
      %v1151 = vsub.f32 %v365, %v1150
      %v1152 = vand.u32 %v1151, 4294901760
      %v1153 = vsub.f32 %v1151, %v1152
      %v1154 = vand.u32 %v1153, 4294901760
      %1155 = vmatpush.msra.mxu0 %v1154
      %v1156 = vand.u32 %v361, 4294901760
      %v1157 = vsub.f32 %v361, %v1156
      %v1158 = vand.u32 %v1157, 4294901760
      %v1159 = vsub.f32 %v1157, %v1158
      %v1160 = vand.u32 %v1159, 4294901760
      %1161 = vmatpush.msra.mxu0 %v1160
      %v1162 = vand.u32 %v357, 4294901760
      %v1163 = vsub.f32 %v357, %v1162
      %v1164 = vand.u32 %v1163, 4294901760
      %v1165 = vsub.f32 %v1163, %v1164
      %v1166 = vand.u32 %v1165, 4294901760
      %1167 = vmatpush.msra.mxu0 %v1166
      %v1168 = vand.u32 %v353, 4294901760
      %v1169 = vsub.f32 %v353, %v1168
      %v1170 = vand.u32 %v1169, 4294901760
      %v1171 = vsub.f32 %v1169, %v1170
      %v1172 = vand.u32 %v1171, 4294901760
      %1173 = vmatpush.msra.mxu0 %v1172
      %v1174 = vand.u32 %v349, 4294901760
      %v1175 = vsub.f32 %v349, %v1174
      %v1176 = vand.u32 %v1175, 4294901760
      %v1177 = vsub.f32 %v1175, %v1176
      %v1178 = vand.u32 %v1177, 4294901760
      %1179 = vmatpush.msra.mxu0 %v1178
      %v1180 = vand.u32 %v345, 4294901760
      %v1181 = vsub.f32 %v345, %v1180
      %v1182 = vand.u32 %v1181, 4294901760
      %v1183 = vsub.f32 %v1181, %v1182
      %v1184 = vand.u32 %v1183, 4294901760
      %1185 = vmatpush.msra.mxu0 %v1184
      %v1186 = vand.u32 %v341, 4294901760
      %v1187 = vsub.f32 %v341, %v1186
      %v1188 = vand.u32 %v1187, 4294901760
      %v1189 = vsub.f32 %v1187, %v1188
      %v1190 = vand.u32 %v1189, 4294901760
      %1191 = vmatpush.msra.mxu0 %v1190
      %v1192 = vand.u32 %v337, 4294901760
      %v1193 = vsub.f32 %v337, %v1192
      %v1194 = vand.u32 %v1193, 4294901760
      %v1195 = vsub.f32 %v1193, %v1194
      %v1196 = vand.u32 %v1195, 4294901760
      %1197 = vmatpush.msra.mxu0 %v1196
      %v1198 = vand.u32 %v333, 4294901760
      %v1199 = vsub.f32 %v333, %v1198
      %v1200 = vand.u32 %v1199, 4294901760
      %v1201 = vsub.f32 %v1199, %v1200
      %v1202 = vand.u32 %v1201, 4294901760
      %1203 = vmatpush.msra.mxu0 %v1202
      %v1204 = vand.u32 %v329, 4294901760
      %v1205 = vsub.f32 %v329, %v1204
      %v1206 = vand.u32 %v1205, 4294901760
      %v1207 = vsub.f32 %v1205, %v1206
      %v1208 = vand.u32 %v1207, 4294901760
      %1209 = vmatpush.msra.mxu0 %v1208
      %v1210 = vand.u32 %v324, 4294901760
      %1211 = vmatmul.f32.gmra.mxu0 %v1210
      %v1212 = vpop.f32.mrf.mxu0
      %v1213 = vadd.f32 %v1112, %v1212
      %1214 = vdwg.mxu0
      %v1215 = vand.u32 %v389, 4294901760
      %v1216 = vsub.f32 %v389, %v1215
      %1217 = vmatpush.msra.mxu0 %v1216
      %v1218 = vand.u32 %v385, 4294901760
      %v1219 = vsub.f32 %v385, %v1218
      %1220 = vmatpush.msra.mxu0 %v1219
      %v1221 = vand.u32 %v381, 4294901760
      %v1222 = vsub.f32 %v381, %v1221
      %1223 = vmatpush.msra.mxu0 %v1222
      %v1224 = vand.u32 %v377, 4294901760
      %v1225 = vsub.f32 %v377, %v1224
      %1226 = vmatpush.msra.mxu0 %v1225
      %v1227 = vand.u32 %v373, 4294901760
      %v1228 = vsub.f32 %v373, %v1227
      %1229 = vmatpush.msra.mxu0 %v1228
      %v1230 = vand.u32 %v369, 4294901760
      %v1231 = vsub.f32 %v369, %v1230
      %1232 = vmatpush.msra.mxu0 %v1231
      %v1233 = vand.u32 %v365, 4294901760
      %v1234 = vsub.f32 %v365, %v1233
      %1235 = vmatpush.msra.mxu0 %v1234
      %v1236 = vand.u32 %v361, 4294901760
      %v1237 = vsub.f32 %v361, %v1236
      %1238 = vmatpush.msra.mxu0 %v1237
      %v1239 = vand.u32 %v357, 4294901760
      %v1240 = vsub.f32 %v357, %v1239
      %1241 = vmatpush.msra.mxu0 %v1240
      %v1242 = vand.u32 %v353, 4294901760
      %v1243 = vsub.f32 %v353, %v1242
      %1244 = vmatpush.msra.mxu0 %v1243
      %v1245 = vand.u32 %v349, 4294901760
      %v1246 = vsub.f32 %v349, %v1245
      %1247 = vmatpush.msra.mxu0 %v1246
      %v1248 = vand.u32 %v345, 4294901760
      %v1249 = vsub.f32 %v345, %v1248
      %1250 = vmatpush.msra.mxu0 %v1249
      %v1251 = vand.u32 %v341, 4294901760
      %v1252 = vsub.f32 %v341, %v1251
      %1253 = vmatpush.msra.mxu0 %v1252
      %v1254 = vand.u32 %v337, 4294901760
      %v1255 = vsub.f32 %v337, %v1254
      %1256 = vmatpush.msra.mxu0 %v1255
      %v1257 = vand.u32 %v333, 4294901760
      %v1258 = vsub.f32 %v333, %v1257
      %1259 = vmatpush.msra.mxu0 %v1258
      %v1260 = vand.u32 %v329, 4294901760
      %v1261 = vsub.f32 %v329, %v1260
      %1262 = vmatpush.msra.mxu0 %v1261
      %v1263 = vand.u32 %v324, 4294901760
      %v1264 = vsub.f32 %v324, %v1263
      %1265 = vmatmul.f32.gmra.mxu0 %v1264
      %v1266 = vpop.f32.mrf.mxu0
      %v1267 = vadd.f32 %v1213, %v1266
      %1268 = vdwg.mxu0
      %v1269 = vand.u32 %v389, 4294901760
      %1270 = vmatpush.msra.mxu0 %v1269
      %v1271 = vand.u32 %v385, 4294901760
      %1272 = vmatpush.msra.mxu0 %v1271
      %v1273 = vand.u32 %v381, 4294901760
      %1274 = vmatpush.msra.mxu0 %v1273
      %v1275 = vand.u32 %v377, 4294901760
      %1276 = vmatpush.msra.mxu0 %v1275
      %v1277 = vand.u32 %v373, 4294901760
      %1278 = vmatpush.msra.mxu0 %v1277
      %v1279 = vand.u32 %v369, 4294901760
      %1280 = vmatpush.msra.mxu0 %v1279
      %v1281 = vand.u32 %v365, 4294901760
      %1282 = vmatpush.msra.mxu0 %v1281
      %v1283 = vand.u32 %v361, 4294901760
      %1284 = vmatpush.msra.mxu0 %v1283
      %v1285 = vand.u32 %v357, 4294901760
      %1286 = vmatpush.msra.mxu0 %v1285
      %v1287 = vand.u32 %v353, 4294901760
      %1288 = vmatpush.msra.mxu0 %v1287
      %v1289 = vand.u32 %v349, 4294901760
      %1290 = vmatpush.msra.mxu0 %v1289
      %v1291 = vand.u32 %v345, 4294901760
      %1292 = vmatpush.msra.mxu0 %v1291
      %v1293 = vand.u32 %v341, 4294901760
      %1294 = vmatpush.msra.mxu0 %v1293
      %v1295 = vand.u32 %v337, 4294901760
      %1296 = vmatpush.msra.mxu0 %v1295
      %v1297 = vand.u32 %v333, 4294901760
      %1298 = vmatpush.msra.mxu0 %v1297
      %v1299 = vand.u32 %v329, 4294901760
      %1300 = vmatpush.msra.mxu0 %v1299
      %v1301 = vand.u32 %v324, 4294901760
      %v1302 = vsub.f32 %v324, %v1301
      %v1303 = vand.u32 %v1302, 4294901760
      %1304 = vmatmul.f32.gmra.mxu0 %v1303
      %v1305 = vpop.f32.mrf.mxu0
      %v1306 = vadd.f32 %v1267, %v1305
      %1307 = vdwg.mxu0
      %v1308 = vand.u32 %v389, 4294901760
      %v1309 = vsub.f32 %v389, %v1308
      %v1310 = vand.u32 %v1309, 4294901760
      %1311 = vmatpush.msra.mxu0 %v1310
      %v1312 = vand.u32 %v385, 4294901760
      %v1313 = vsub.f32 %v385, %v1312
      %v1314 = vand.u32 %v1313, 4294901760
      %1315 = vmatpush.msra.mxu0 %v1314
      %v1316 = vand.u32 %v381, 4294901760
      %v1317 = vsub.f32 %v381, %v1316
      %v1318 = vand.u32 %v1317, 4294901760
      %1319 = vmatpush.msra.mxu0 %v1318
      %v1320 = vand.u32 %v377, 4294901760
      %v1321 = vsub.f32 %v377, %v1320
      %v1322 = vand.u32 %v1321, 4294901760
      %1323 = vmatpush.msra.mxu0 %v1322
      %v1324 = vand.u32 %v373, 4294901760
      %v1325 = vsub.f32 %v373, %v1324
      %v1326 = vand.u32 %v1325, 4294901760
      %1327 = vmatpush.msra.mxu0 %v1326
      %v1328 = vand.u32 %v369, 4294901760
      %v1329 = vsub.f32 %v369, %v1328
      %v1330 = vand.u32 %v1329, 4294901760
      %1331 = vmatpush.msra.mxu0 %v1330
      %v1332 = vand.u32 %v365, 4294901760
      %v1333 = vsub.f32 %v365, %v1332
      %v1334 = vand.u32 %v1333, 4294901760
      %1335 = vmatpush.msra.mxu0 %v1334
      %v1336 = vand.u32 %v361, 4294901760
      %v1337 = vsub.f32 %v361, %v1336
      %v1338 = vand.u32 %v1337, 4294901760
      %1339 = vmatpush.msra.mxu0 %v1338
      %v1340 = vand.u32 %v357, 4294901760
      %v1341 = vsub.f32 %v357, %v1340
      %v1342 = vand.u32 %v1341, 4294901760
      %1343 = vmatpush.msra.mxu0 %v1342
      %v1344 = vand.u32 %v353, 4294901760
      %v1345 = vsub.f32 %v353, %v1344
      %v1346 = vand.u32 %v1345, 4294901760
      %1347 = vmatpush.msra.mxu0 %v1346
      %v1348 = vand.u32 %v349, 4294901760
      %v1349 = vsub.f32 %v349, %v1348
      %v1350 = vand.u32 %v1349, 4294901760
      %1351 = vmatpush.msra.mxu0 %v1350
      %v1352 = vand.u32 %v345, 4294901760
      %v1353 = vsub.f32 %v345, %v1352
      %v1354 = vand.u32 %v1353, 4294901760
      %1355 = vmatpush.msra.mxu0 %v1354
      %v1356 = vand.u32 %v341, 4294901760
      %v1357 = vsub.f32 %v341, %v1356
      %v1358 = vand.u32 %v1357, 4294901760
      %1359 = vmatpush.msra.mxu0 %v1358
      %v1360 = vand.u32 %v337, 4294901760
      %v1361 = vsub.f32 %v337, %v1360
      %v1362 = vand.u32 %v1361, 4294901760
      %1363 = vmatpush.msra.mxu0 %v1362
      %v1364 = vand.u32 %v333, 4294901760
      %v1365 = vsub.f32 %v333, %v1364
      %v1366 = vand.u32 %v1365, 4294901760
      %1367 = vmatpush.msra.mxu0 %v1366
      %v1368 = vand.u32 %v329, 4294901760
      %v1369 = vsub.f32 %v329, %v1368
      %v1370 = vand.u32 %v1369, 4294901760
      %1371 = vmatpush.msra.mxu0 %v1370
      %v1372 = vand.u32 %v324, 4294901760
      %1373 = vmatmul.f32.gmra.mxu0 %v1372
      %v1374 = vpop.f32.mrf.mxu0
      %v1375 = vadd.f32 %v1306, %v1374
      %1376 = vdwg.mxu0
      %v1377 = vand.u32 %v389, 4294901760
      %1378 = vmatpush.msra.mxu0 %v1377
      %v1379 = vand.u32 %v385, 4294901760
      %1380 = vmatpush.msra.mxu0 %v1379
      %v1381 = vand.u32 %v381, 4294901760
      %1382 = vmatpush.msra.mxu0 %v1381
      %v1383 = vand.u32 %v377, 4294901760
      %1384 = vmatpush.msra.mxu0 %v1383
      %v1385 = vand.u32 %v373, 4294901760
      %1386 = vmatpush.msra.mxu0 %v1385
      %v1387 = vand.u32 %v369, 4294901760
      %1388 = vmatpush.msra.mxu0 %v1387
      %v1389 = vand.u32 %v365, 4294901760
      %1390 = vmatpush.msra.mxu0 %v1389
      %v1391 = vand.u32 %v361, 4294901760
      %1392 = vmatpush.msra.mxu0 %v1391
      %v1393 = vand.u32 %v357, 4294901760
      %1394 = vmatpush.msra.mxu0 %v1393
      %v1395 = vand.u32 %v353, 4294901760
      %1396 = vmatpush.msra.mxu0 %v1395
      %v1397 = vand.u32 %v349, 4294901760
      %1398 = vmatpush.msra.mxu0 %v1397
      %v1399 = vand.u32 %v345, 4294901760
      %1400 = vmatpush.msra.mxu0 %v1399
      %v1401 = vand.u32 %v341, 4294901760
      %1402 = vmatpush.msra.mxu0 %v1401
      %v1403 = vand.u32 %v337, 4294901760
      %1404 = vmatpush.msra.mxu0 %v1403
      %v1405 = vand.u32 %v333, 4294901760
      %1406 = vmatpush.msra.mxu0 %v1405
      %v1407 = vand.u32 %v329, 4294901760
      %1408 = vmatpush.msra.mxu0 %v1407
      %v1409 = vand.u32 %v324, 4294901760
      %1410 = vmatmul.f32.gmra.mxu0 %v1409
      %v1411 = vpop.f32.mrf.mxu0
      %v1412 = vadd.f32 %v1375, %v1411
      %1413 = vdwg.mxu0
      %v1414 = vand.u32 %v390, 4294901760
      %1415 = vmatpush.msra.mxu0 %v1414
      %v1416 = vand.u32 %v386, 4294901760
      %1417 = vmatpush.msra.mxu0 %v1416
      %v1418 = vand.u32 %v382, 4294901760
      %1419 = vmatpush.msra.mxu0 %v1418
      %v1420 = vand.u32 %v378, 4294901760
      %1421 = vmatpush.msra.mxu0 %v1420
      %v1422 = vand.u32 %v374, 4294901760
      %1423 = vmatpush.msra.mxu0 %v1422
      %v1424 = vand.u32 %v370, 4294901760
      %1425 = vmatpush.msra.mxu0 %v1424
      %v1426 = vand.u32 %v366, 4294901760
      %1427 = vmatpush.msra.mxu0 %v1426
      %v1428 = vand.u32 %v362, 4294901760
      %1429 = vmatpush.msra.mxu0 %v1428
      %v1430 = vand.u32 %v358, 4294901760
      %1431 = vmatpush.msra.mxu0 %v1430
      %v1432 = vand.u32 %v354, 4294901760
      %1433 = vmatpush.msra.mxu0 %v1432
      %v1434 = vand.u32 %v350, 4294901760
      %1435 = vmatpush.msra.mxu0 %v1434
      %v1436 = vand.u32 %v346, 4294901760
      %1437 = vmatpush.msra.mxu0 %v1436
      %v1438 = vand.u32 %v342, 4294901760
      %1439 = vmatpush.msra.mxu0 %v1438
      %v1440 = vand.u32 %v338, 4294901760
      %1441 = vmatpush.msra.mxu0 %v1440
      %v1442 = vand.u32 %v334, 4294901760
      %1443 = vmatpush.msra.mxu0 %v1442
      %v1444 = vand.u32 %v330, 4294901760
      %1445 = vmatpush.msra.mxu0 %v1444
      %v1446 = vand.u32 %v324, 4294901760
      %v1447 = vsub.f32 %v324, %v1446
      %v1448 = vand.u32 %v1447, 4294901760
      %v1449 = vsub.f32 %v1447, %v1448
      %v1450 = vand.u32 %v1449, 4294901760
      %1451 = vmatmul.f32.gmra.mxu0 %v1450
      %v1452 = vpop.f32.mrf.mxu0
      %v1453 = vadd.f32 0.0, %v1452
      %1454 = vdwg.mxu0
      %v1455 = vand.u32 %v390, 4294901760
      %v1456 = vsub.f32 %v390, %v1455
      %v1457 = vand.u32 %v1456, 4294901760
      %v1458 = vsub.f32 %v1456, %v1457
      %v1459 = vand.u32 %v1458, 4294901760
      %1460 = vmatpush.msra.mxu0 %v1459
      %v1461 = vand.u32 %v386, 4294901760
      %v1462 = vsub.f32 %v386, %v1461
      %v1463 = vand.u32 %v1462, 4294901760
      %v1464 = vsub.f32 %v1462, %v1463
      %v1465 = vand.u32 %v1464, 4294901760
      %1466 = vmatpush.msra.mxu0 %v1465
      %v1467 = vand.u32 %v382, 4294901760
      %v1468 = vsub.f32 %v382, %v1467
      %v1469 = vand.u32 %v1468, 4294901760
      %v1470 = vsub.f32 %v1468, %v1469
      %v1471 = vand.u32 %v1470, 4294901760
      %1472 = vmatpush.msra.mxu0 %v1471
      %v1473 = vand.u32 %v378, 4294901760
      %v1474 = vsub.f32 %v378, %v1473
      %v1475 = vand.u32 %v1474, 4294901760
      %v1476 = vsub.f32 %v1474, %v1475
      %v1477 = vand.u32 %v1476, 4294901760
      %1478 = vmatpush.msra.mxu0 %v1477
      %v1479 = vand.u32 %v374, 4294901760
      %v1480 = vsub.f32 %v374, %v1479
      %v1481 = vand.u32 %v1480, 4294901760
      %v1482 = vsub.f32 %v1480, %v1481
      %v1483 = vand.u32 %v1482, 4294901760
      %1484 = vmatpush.msra.mxu0 %v1483
      %v1485 = vand.u32 %v370, 4294901760
      %v1486 = vsub.f32 %v370, %v1485
      %v1487 = vand.u32 %v1486, 4294901760
      %v1488 = vsub.f32 %v1486, %v1487
      %v1489 = vand.u32 %v1488, 4294901760
      %1490 = vmatpush.msra.mxu0 %v1489
      %v1491 = vand.u32 %v366, 4294901760
      %v1492 = vsub.f32 %v366, %v1491
      %v1493 = vand.u32 %v1492, 4294901760
      %v1494 = vsub.f32 %v1492, %v1493
      %v1495 = vand.u32 %v1494, 4294901760
      %1496 = vmatpush.msra.mxu0 %v1495
      %v1497 = vand.u32 %v362, 4294901760
      %v1498 = vsub.f32 %v362, %v1497
      %v1499 = vand.u32 %v1498, 4294901760
      %v1500 = vsub.f32 %v1498, %v1499
      %v1501 = vand.u32 %v1500, 4294901760
      %1502 = vmatpush.msra.mxu0 %v1501
      %v1503 = vand.u32 %v358, 4294901760
      %v1504 = vsub.f32 %v358, %v1503
      %v1505 = vand.u32 %v1504, 4294901760
      %v1506 = vsub.f32 %v1504, %v1505
      %v1507 = vand.u32 %v1506, 4294901760
      %1508 = vmatpush.msra.mxu0 %v1507
      %v1509 = vand.u32 %v354, 4294901760
      %v1510 = vsub.f32 %v354, %v1509
      %v1511 = vand.u32 %v1510, 4294901760
      %v1512 = vsub.f32 %v1510, %v1511
      %v1513 = vand.u32 %v1512, 4294901760
      %1514 = vmatpush.msra.mxu0 %v1513
      %v1515 = vand.u32 %v350, 4294901760
      %v1516 = vsub.f32 %v350, %v1515
      %v1517 = vand.u32 %v1516, 4294901760
      %v1518 = vsub.f32 %v1516, %v1517
      %v1519 = vand.u32 %v1518, 4294901760
      %1520 = vmatpush.msra.mxu0 %v1519
      %v1521 = vand.u32 %v346, 4294901760
      %v1522 = vsub.f32 %v346, %v1521
      %v1523 = vand.u32 %v1522, 4294901760
      %v1524 = vsub.f32 %v1522, %v1523
      %v1525 = vand.u32 %v1524, 4294901760
      %1526 = vmatpush.msra.mxu0 %v1525
      %v1527 = vand.u32 %v342, 4294901760
      %v1528 = vsub.f32 %v342, %v1527
      %v1529 = vand.u32 %v1528, 4294901760
      %v1530 = vsub.f32 %v1528, %v1529
      %v1531 = vand.u32 %v1530, 4294901760
      %1532 = vmatpush.msra.mxu0 %v1531
      %v1533 = vand.u32 %v338, 4294901760
      %v1534 = vsub.f32 %v338, %v1533
      %v1535 = vand.u32 %v1534, 4294901760
      %v1536 = vsub.f32 %v1534, %v1535
      %v1537 = vand.u32 %v1536, 4294901760
      %1538 = vmatpush.msra.mxu0 %v1537
      %v1539 = vand.u32 %v334, 4294901760
      %v1540 = vsub.f32 %v334, %v1539
      %v1541 = vand.u32 %v1540, 4294901760
      %v1542 = vsub.f32 %v1540, %v1541
      %v1543 = vand.u32 %v1542, 4294901760
      %1544 = vmatpush.msra.mxu0 %v1543
      %v1545 = vand.u32 %v330, 4294901760
      %v1546 = vsub.f32 %v330, %v1545
      %v1547 = vand.u32 %v1546, 4294901760
      %v1548 = vsub.f32 %v1546, %v1547
      %v1549 = vand.u32 %v1548, 4294901760
      %1550 = vmatpush.msra.mxu0 %v1549
      %v1551 = vand.u32 %v324, 4294901760
      %1552 = vmatmul.f32.gmra.mxu0 %v1551
      %v1553 = vpop.f32.mrf.mxu0
      %v1554 = vadd.f32 %v1453, %v1553
      %1555 = vdwg.mxu0
      %v1556 = vand.u32 %v390, 4294901760
      %v1557 = vsub.f32 %v390, %v1556
      %1558 = vmatpush.msra.mxu0 %v1557
      %v1559 = vand.u32 %v386, 4294901760
      %v1560 = vsub.f32 %v386, %v1559
      %1561 = vmatpush.msra.mxu0 %v1560
      %v1562 = vand.u32 %v382, 4294901760
      %v1563 = vsub.f32 %v382, %v1562
      %1564 = vmatpush.msra.mxu0 %v1563
      %v1565 = vand.u32 %v378, 4294901760
      %v1566 = vsub.f32 %v378, %v1565
      %1567 = vmatpush.msra.mxu0 %v1566
      %v1568 = vand.u32 %v374, 4294901760
      %v1569 = vsub.f32 %v374, %v1568
      %1570 = vmatpush.msra.mxu0 %v1569
      %v1571 = vand.u32 %v370, 4294901760
      %v1572 = vsub.f32 %v370, %v1571
      %1573 = vmatpush.msra.mxu0 %v1572
      %v1574 = vand.u32 %v366, 4294901760
      %v1575 = vsub.f32 %v366, %v1574
      %1576 = vmatpush.msra.mxu0 %v1575
      %v1577 = vand.u32 %v362, 4294901760
      %v1578 = vsub.f32 %v362, %v1577
      %1579 = vmatpush.msra.mxu0 %v1578
      %v1580 = vand.u32 %v358, 4294901760
      %v1581 = vsub.f32 %v358, %v1580
      %1582 = vmatpush.msra.mxu0 %v1581
      %v1583 = vand.u32 %v354, 4294901760
      %v1584 = vsub.f32 %v354, %v1583
      %1585 = vmatpush.msra.mxu0 %v1584
      %v1586 = vand.u32 %v350, 4294901760
      %v1587 = vsub.f32 %v350, %v1586
      %1588 = vmatpush.msra.mxu0 %v1587
      %v1589 = vand.u32 %v346, 4294901760
      %v1590 = vsub.f32 %v346, %v1589
      %1591 = vmatpush.msra.mxu0 %v1590
      %v1592 = vand.u32 %v342, 4294901760
      %v1593 = vsub.f32 %v342, %v1592
      %1594 = vmatpush.msra.mxu0 %v1593
      %v1595 = vand.u32 %v338, 4294901760
      %v1596 = vsub.f32 %v338, %v1595
      %1597 = vmatpush.msra.mxu0 %v1596
      %v1598 = vand.u32 %v334, 4294901760
      %v1599 = vsub.f32 %v334, %v1598
      %1600 = vmatpush.msra.mxu0 %v1599
      %v1601 = vand.u32 %v330, 4294901760
      %v1602 = vsub.f32 %v330, %v1601
      %1603 = vmatpush.msra.mxu0 %v1602
      %v1604 = vand.u32 %v324, 4294901760
      %v1605 = vsub.f32 %v324, %v1604
      %1606 = vmatmul.f32.gmra.mxu0 %v1605
      %v1607 = vpop.f32.mrf.mxu0
      %v1608 = vadd.f32 %v1554, %v1607
      %1609 = vdwg.mxu0
      %v1610 = vand.u32 %v390, 4294901760
      %1611 = vmatpush.msra.mxu0 %v1610
      %v1612 = vand.u32 %v386, 4294901760
      %1613 = vmatpush.msra.mxu0 %v1612
      %v1614 = vand.u32 %v382, 4294901760
      %1615 = vmatpush.msra.mxu0 %v1614
      %v1616 = vand.u32 %v378, 4294901760
      %1617 = vmatpush.msra.mxu0 %v1616
      %v1618 = vand.u32 %v374, 4294901760
      %1619 = vmatpush.msra.mxu0 %v1618
      %v1620 = vand.u32 %v370, 4294901760
      %1621 = vmatpush.msra.mxu0 %v1620
      %v1622 = vand.u32 %v366, 4294901760
      %1623 = vmatpush.msra.mxu0 %v1622
      %v1624 = vand.u32 %v362, 4294901760
      %1625 = vmatpush.msra.mxu0 %v1624
      %v1626 = vand.u32 %v358, 4294901760
      %1627 = vmatpush.msra.mxu0 %v1626
      %v1628 = vand.u32 %v354, 4294901760
      %1629 = vmatpush.msra.mxu0 %v1628
      %v1630 = vand.u32 %v350, 4294901760
      %1631 = vmatpush.msra.mxu0 %v1630
      %v1632 = vand.u32 %v346, 4294901760
      %1633 = vmatpush.msra.mxu0 %v1632
      %v1634 = vand.u32 %v342, 4294901760
      %1635 = vmatpush.msra.mxu0 %v1634
      %v1636 = vand.u32 %v338, 4294901760
      %1637 = vmatpush.msra.mxu0 %v1636
      %v1638 = vand.u32 %v334, 4294901760
      %1639 = vmatpush.msra.mxu0 %v1638
      %v1640 = vand.u32 %v330, 4294901760
      %1641 = vmatpush.msra.mxu0 %v1640
      %v1642 = vand.u32 %v324, 4294901760
      %v1643 = vsub.f32 %v324, %v1642
      %v1644 = vand.u32 %v1643, 4294901760
      %1645 = vmatmul.f32.gmra.mxu0 %v1644
      %v1646 = vpop.f32.mrf.mxu0
      %v1647 = vadd.f32 %v1608, %v1646
      %1648 = vdwg.mxu0
      %v1649 = vand.u32 %v390, 4294901760
      %v1650 = vsub.f32 %v390, %v1649
      %v1651 = vand.u32 %v1650, 4294901760
      %1652 = vmatpush.msra.mxu0 %v1651
      %v1653 = vand.u32 %v386, 4294901760
      %v1654 = vsub.f32 %v386, %v1653
      %v1655 = vand.u32 %v1654, 4294901760
      %1656 = vmatpush.msra.mxu0 %v1655
      %v1657 = vand.u32 %v382, 4294901760
      %v1658 = vsub.f32 %v382, %v1657
      %v1659 = vand.u32 %v1658, 4294901760
      %1660 = vmatpush.msra.mxu0 %v1659
      %v1661 = vand.u32 %v378, 4294901760
      %v1662 = vsub.f32 %v378, %v1661
      %v1663 = vand.u32 %v1662, 4294901760
      %1664 = vmatpush.msra.mxu0 %v1663
      %v1665 = vand.u32 %v374, 4294901760
      %v1666 = vsub.f32 %v374, %v1665
      %v1667 = vand.u32 %v1666, 4294901760
      %1668 = vmatpush.msra.mxu0 %v1667
      %v1669 = vand.u32 %v370, 4294901760
      %v1670 = vsub.f32 %v370, %v1669
      %v1671 = vand.u32 %v1670, 4294901760
      %1672 = vmatpush.msra.mxu0 %v1671
      %v1673 = vand.u32 %v366, 4294901760
      %v1674 = vsub.f32 %v366, %v1673
      %v1675 = vand.u32 %v1674, 4294901760
      %1676 = vmatpush.msra.mxu0 %v1675
      %v1677 = vand.u32 %v362, 4294901760
      %v1678 = vsub.f32 %v362, %v1677
      %v1679 = vand.u32 %v1678, 4294901760
      %1680 = vmatpush.msra.mxu0 %v1679
      %v1681 = vand.u32 %v358, 4294901760
      %v1682 = vsub.f32 %v358, %v1681
      %v1683 = vand.u32 %v1682, 4294901760
      %1684 = vmatpush.msra.mxu0 %v1683
      %v1685 = vand.u32 %v354, 4294901760
      %v1686 = vsub.f32 %v354, %v1685
      %v1687 = vand.u32 %v1686, 4294901760
      %1688 = vmatpush.msra.mxu0 %v1687
      %v1689 = vand.u32 %v350, 4294901760
      %v1690 = vsub.f32 %v350, %v1689
      %v1691 = vand.u32 %v1690, 4294901760
      %1692 = vmatpush.msra.mxu0 %v1691
      %v1693 = vand.u32 %v346, 4294901760
      %v1694 = vsub.f32 %v346, %v1693
      %v1695 = vand.u32 %v1694, 4294901760
      %1696 = vmatpush.msra.mxu0 %v1695
      %v1697 = vand.u32 %v342, 4294901760
      %v1698 = vsub.f32 %v342, %v1697
      %v1699 = vand.u32 %v1698, 4294901760
      %1700 = vmatpush.msra.mxu0 %v1699
      %v1701 = vand.u32 %v338, 4294901760
      %v1702 = vsub.f32 %v338, %v1701
      %v1703 = vand.u32 %v1702, 4294901760
      %1704 = vmatpush.msra.mxu0 %v1703
      %v1705 = vand.u32 %v334, 4294901760
      %v1706 = vsub.f32 %v334, %v1705
      %v1707 = vand.u32 %v1706, 4294901760
      %1708 = vmatpush.msra.mxu0 %v1707
      %v1709 = vand.u32 %v330, 4294901760
      %v1710 = vsub.f32 %v330, %v1709
      %v1711 = vand.u32 %v1710, 4294901760
      %1712 = vmatpush.msra.mxu0 %v1711
      %v1713 = vand.u32 %v324, 4294901760
      %1714 = vmatmul.f32.gmra.mxu0 %v1713
      %v1715 = vpop.f32.mrf.mxu0
      %v1716 = vadd.f32 %v1647, %v1715
      %1717 = vdwg.mxu0
      %v1718 = vand.u32 %v390, 4294901760
      %1719 = vmatpush.msra.mxu0 %v1718
      %v1720 = vand.u32 %v386, 4294901760
      %1721 = vmatpush.msra.mxu0 %v1720
      %v1722 = vand.u32 %v382, 4294901760
      %1723 = vmatpush.msra.mxu0 %v1722
      %v1724 = vand.u32 %v378, 4294901760
      %1725 = vmatpush.msra.mxu0 %v1724
      %v1726 = vand.u32 %v374, 4294901760
      %1727 = vmatpush.msra.mxu0 %v1726
      %v1728 = vand.u32 %v370, 4294901760
      %1729 = vmatpush.msra.mxu0 %v1728
      %v1730 = vand.u32 %v366, 4294901760
      %1731 = vmatpush.msra.mxu0 %v1730
      %v1732 = vand.u32 %v362, 4294901760
      %1733 = vmatpush.msra.mxu0 %v1732
      %v1734 = vand.u32 %v358, 4294901760
      %1735 = vmatpush.msra.mxu0 %v1734
      %v1736 = vand.u32 %v354, 4294901760
      %1737 = vmatpush.msra.mxu0 %v1736
      %v1738 = vand.u32 %v350, 4294901760
      %1739 = vmatpush.msra.mxu0 %v1738
      %v1740 = vand.u32 %v346, 4294901760
      %1741 = vmatpush.msra.mxu0 %v1740
      %v1742 = vand.u32 %v342, 4294901760
      %1743 = vmatpush.msra.mxu0 %v1742
      %v1744 = vand.u32 %v338, 4294901760
      %1745 = vmatpush.msra.mxu0 %v1744
      %v1746 = vand.u32 %v334, 4294901760
      %1747 = vmatpush.msra.mxu0 %v1746
      %v1748 = vand.u32 %v330, 4294901760
      %1749 = vmatpush.msra.mxu0 %v1748
      %v1750 = vand.u32 %v324, 4294901760
      %1751 = vmatmul.f32.gmra.mxu0 %v1750
      %v1752 = vpop.f32.mrf.mxu0
      %v1753 = vadd.f32 %v1716, %v1752
      %1754 = vdwg.mxu0
      %v1759 = vrot.slane %v1071, 4
      %v1760 = vrot.slane %v1753, 4
      %vm1761 = vcmask 1043456
      %v1762 = vsel %vm1761, %v730, %v1759
      %v1763 = vsel %vm1761, %v1412, %v1760
      %1766 = vst [vmem:[%s293] sm:$0x33] %v1762
      %1767 = vst [vmem:[%s293 + $0x8] sm:$0x33] %v1763
      %v1768 = vld [vmem:[%s283] sm:$0xff]
      %s1770 = scalar_lea.vmem [#allocation1], 1
      %1771 = vst [vmem:[%s1770] ss:$2 sm:$0xff] %v1768
      %v1772 = vld.sshfl [vmem:[#allocation1] sm:$0xff pattern:$0x75643120]
      %v1773 = vld.sshfl [vmem:[#allocation1 + $0x8] sm:$0xff pattern:$0x75643120]
      %1776 = vst [vmem:[%s293] sm:$0xcc] %v1772
      %1777 = vst [vmem:[%s293 + $0x8] sm:$0xcc] %v1773
      %s1778 = smul.u32 4, %s21
      %p1779 = scmp.lt.s32.totalorder %s20, 1
      %s1780 = scalar_select %p1779, %s20, 1
      %p1781 = scmp.lt.s32.totalorder %s1778, 7
      %s1782 = scalar_select %p1781, %s1778, 7
      %s1783 = smul.addr %s1780, 8
      %s1784 = sadd.s32 %s1782, %s1783
      %s1785 = smul.addr %s1784, 4
      %s1786 = scalar_lea.vmem %s5, %s1785
      // Predicated region
      $region41: #{upsample_forward.1} parent=39 // pred_check
        %p1787 = pneg %p167
      $region42: #{upsample_forward.1} parent=39 // pred_check_branch
        %1789 = sbr.rel (%p1787) target = $region44
      $region43: #{upsample_forward.1} parent=39 // pred_region
        %s1790 = smul.u32 4, %s21
      $region44: #{upsample_forward.1} parent=39 // pred_fallthru
        _
    $region40: #{upsample_forward.1} parent=5 // pred_fallthru
      _
    %p1791 = scmp.le.s32.totalorder 2, %s11
    // Predicated region
    $region45: #{upsample_forward.1} parent=5 // pred_check
      %p1792 = pneg %p1791
    $region46: #{upsample_forward.1} parent=5 // pred_check_branch
      %1794 = sbr.rel (%p1792) target = $region48
    $region47: #{upsample_forward.1} parent=5 // pred_region
      %s1795 = ssub.s32 %s11, 2
      // Predicated region
      $region49: #{upsample_forward.1} parent=47 // pred_check
        %p1796 = pneg %p173
      $region50: #{upsample_forward.1} parent=47 // pred_check_branch
        %1798 = sbr.rel (%p1796) target = $region52
      $region51: #{upsample_forward.1} parent=47 // pred_region
        %s1799 = smul.u32 4, %s23
        %p1800 = scmp.lt.s32.totalorder %s22, 1
        %s1801 = scalar_select %p1800, %s22, 1
        %p1802 = scmp.lt.s32.totalorder %s1799, 7
        %s1803 = scalar_select %p1802, %s1799, 7
        %s1804 = smul.addr %s1801, 8
        %s1805 = sadd.s32 %s1803, %s1804
        %s1806 = smul.addr %s1805, 4
        %s1807 = scalar_lea.vmem %s5, %s1806
      $region52: #{upsample_forward.1} parent=47 // pred_fallthru
        _
    $region48: #{upsample_forward.1} parent=5 // pred_fallthru
      _
  $region6: #{upsample_forward.1} parent=0 // loop_footer
    %s15 = sadd.s32 1, %s11
  $region7: #{upsample_forward.1} parent=0 // loop_footer_branch
    %10 = sbr.rel target = $region3
  $region8: #{upsample_forward.1} parent=0 // loop_exit
    _

</llo_original>
